<compile_context>
chip_gen: v5e
topology: v5e:2x2
jax: 0.10.0
libtpu: 0.0.40
codegen_flags: <defaults>
</compile_context>

<pallas_src>
import functools
import math

import jax
import jax.numpy as jnp
from jax.experimental import pallas as pl
from jax.experimental.pallas import tpu as pltpu


# MXU-operand dtype. bf16 runs the MXU at full rate on v5e/v6e/v7x and halves
# weight DMA/VMEM. Softmax / LayerNorm / residual math stays in f32. Set to
# jnp.float32 to recover full-precision matmuls (then tighten the tolerance in
# __main__ to ~2e-4).
MATMUL_DTYPE = jnp.bfloat16


# ----------------------------- kernel helpers --------------------------------


def _layernorm(x, g, b, eps=1e-5):
    mean = jnp.mean(x, axis=-1, keepdims=True)
    var = jnp.mean((x - mean) ** 2, axis=-1, keepdims=True)
    return (x - mean) * jax.lax.rsqrt(var + eps) * g + b


def _mm(a, b):
    """a @ b with MATMUL_DTYPE operands and f32 accumulation."""
    return jnp.dot(a.astype(MATMUL_DTYPE), b.astype(MATMUL_DTYPE),
                   preferred_element_type=jnp.float32)


def _mm_nt(a, b):
    """a @ b.T (contract last dims) without materializing a transpose."""
    return jax.lax.dot_general(
        a.astype(MATMUL_DTYPE), b.astype(MATMUL_DTYPE),
        dimension_numbers=(((1,), (1,)), ((), ())),
        preferred_element_type=jnp.float32)


def _attention_into_dense(q, k, v, w_out, neg_bias, n_heads, head_dim):
    """Multi-head cross attention fused with the following dense projection.

    q is pre-scaled by 1/sqrt(head_dim).  No lane concat of heads: each head's
    (L, hd) context is multiplied against the matching (hd, H) row block of
    w_out and accumulated.  Returns (L, H) f32 (dense bias not included).
    """
    q = q.astype(MATMUL_DTYPE)
    k = k.astype(MATMUL_DTYPE)
    v = v.astype(MATMUL_DTYPE)
    out = None
    for h in range(n_heads):
        sl = slice(h * head_dim, (h + 1) * head_dim)
        s = _mm_nt(q[:, sl], k[:, sl]) + neg_bias        # (L, L) scores, f32
        s = s - jnp.max(s, axis=-1, keepdims=True)
        p = jnp.exp(s)
        p = p * pl.reciprocal(jnp.sum(p, axis=-1, keepdims=True), approx=True)
        ctx = _mm(p, v[:, sl])                           # (L, hd) f32
        term = _mm(ctx, w_out[sl, :])                    # (L, H)  f32
        out = term if out is None else out + term
    return out


# ----------------------------- kernel -----------------------------------------


def _i_s_block_kernel(n_heads, head_dim, batch_tile,
                      mask_ref, intent_ref, slot_ref,
                      w_i_ref, b_i_ref, w_s_ref, b_s_ref,
                      wo_ref, bo_ref, ln1_g_ref, ln1_b_ref,
                      ffw_i_ref, ffw_s_ref, ff_bin_ref,
                      ffw_out_ref, ff_bout_ref, ln2_g_ref, ln2_b_ref,
                      out_i_ref, out_s_ref):
    L = intent_ref.shape[1]
    H = intent_ref.shape[2]
    inv_scale = 1.0 / math.sqrt(float(head_dim))

    # Weights (already MATMUL_DTYPE) — read once per grid step.
    w_i = w_i_ref[...]
    w_s = w_s_ref[...]
    wo_i = wo_ref[0]
    wo_s = wo_ref[1]
    ffw_i = ffw_i_ref[...]
    ffw_s = ffw_s_ref[...]
    ffw_out = ffw_out_ref[...]

    zero_row = jnp.zeros((1, H), jnp.float32)

    # Static unroll over the sequences of this batch block.
    for j in range(batch_tile):
        x_i = intent_ref[j]                               # (L, H) f32
        x_s = slot_ref[j]                                 # (L, H) f32
        neg = (1.0 - mask_ref[j]) * -10000.0              # (1, L) additive mask

        # ---- fused cross QKV projections: 2 matmuls instead of 6 ------------
        proj_i = _mm(x_i, w_i) + b_i_ref[...]             # [q | k_slot | v_slot]
        proj_s = _mm(x_s, w_s) + b_s_ref[...]             # [k | v | q_slot]
        q = proj_i[:, :H] * inv_scale                     # scale folded into q
        k_s = proj_i[:, H:2 * H]
        v_s = proj_i[:, 2 * H:]
        k = proj_s[:, :H]
        v = proj_s[:, H:2 * H]
        q_s = proj_s[:, 2 * H:] * inv_scale

        # ---- multi-head cross attention + SelfOutput (residual + LN) --------
        attn_i = _attention_into_dense(q, k, v, wo_i, neg, n_heads, head_dim) + bo_ref[0]
        attn_s = _attention_into_dense(q_s, k_s, v_s, wo_s, neg, n_heads, head_dim) + bo_ref[1]
        hi = _layernorm(attn_i + x_i, ln1_g_ref[0], ln1_b_ref[0])
        hs = _layernorm(attn_s + x_s, ln1_g_ref[1], ln1_b_ref[1])

        # ---- Intermediate_I_S: shift-decomposed feed-forward -----------------
        # dense_in([hin, h_left, h_right]) with hin = [hi | hs] is computed as
        #   y = hi @ [W0i|W1i|W2i] + hs @ [W0s|W1s|W2s]        -> (L, 3H)
        # and the sequence shift is applied to y1 / y2 afterwards, using
        # shift(x) @ W == shift(x @ W).  No (L, L) shift matmuls, no concats.
        y = _mm(hi, ffw_i) + _mm(hs, ffw_s)
        y0 = y[:, :H]
        y1 = y[:, H:2 * H]
        y2 = y[:, 2 * H:]
        # h_left[i] = hin[i-1] (zero at row 0); h_right[i] = hin[i+1] (zero at L-1).
        y1_shift = jnp.concatenate([zero_row, y1[:L - 1, :]], axis=0)
        y2_shift = jnp.concatenate([y2[1:, :], zero_row], axis=0)

        h1 = jnp.maximum(y0 + y1_shift + y2_shift + ff_bin_ref[...], 0.0)   # ReLU
        h2 = _mm(h1, ffw_out) + ff_bout_ref[...]

        out_i_ref[j] = _layernorm(h2 + hi, ln2_g_ref[0], ln2_b_ref[0])
        out_s_ref[j] = _layernorm(h2 + hs, ln2_g_ref[1], ln2_b_ref[1])


# ----------------------------- wrapper -----------------------------------------


def _prepare_params(params):
    """Fuse / restack weights once on the host side and cast them to bf16."""
    H = params["ff_wout"].shape[0]
    aw, ab = params["attn_w"], params["attn_b"]
    wdt = MATMUL_DTYPE

    # Projections applied to intent: query, key_slot, value_slot.
    w_i = jnp.concatenate([aw[0], aw[4], aw[5]], axis=1).astype(wdt)   # (H, 3H)
    b_i = jnp.concatenate([ab[0], ab[4], ab[5]], axis=-1)              # (1, 3H)
    # Projections applied to slot: key, value, query_slot.
    w_s = jnp.concatenate([aw[1], aw[2], aw[3]], axis=1).astype(wdt)
    b_s = jnp.concatenate([ab[1], ab[2], ab[3]], axis=-1)

    # dense_in (6H, H) split into the six (H, H) blocks that multiply
    # hi / hs for [hin | h_left | h_right], restacked per input stream.
    fw = params["ff_win"]
    ffw_i = jnp.concatenate([fw[0:H], fw[2 * H:3 * H], fw[4 * H:5 * H]], axis=1).astype(wdt)
    ffw_s = jnp.concatenate([fw[H:2 * H], fw[3 * H:4 * H], fw[5 * H:6 * H]], axis=1).astype(wdt)

    return [
        w_i, b_i, w_s, b_s,
        params["out_w"].astype(wdt), params["out_b"],
        params["out_ln_g"], params["out_ln_b"],
        ffw_i, ffw_s, params["ff_bin"],
        params["ff_wout"].astype(wdt), params["ff_bout"],
        params["ff_ln_g"], params["ff_ln_b"],
    ]


def _pick_batch_tile(B, L):
    # Amortize per-step pipeline overhead over bigger batch blocks, but keep
    # at least two grid steps when possible (v7x has two TensorCores).
    bt = max(1, min(B, 256 // max(L, 1), 8))
    if B >= 2:
        bt = max(1, min(bt, B // 2))
    while B % bt:
        bt -= 1
    return bt


def i_s_block(intent, slot, mask, params, n_heads, batch_tile=None):
    B, L, H = intent.shape
    assert H % n_heads == 0
    head_dim = H // n_heads
    bt = _pick_batch_tile(B, L) if batch_tile is None else batch_tile
    assert B % bt == 0
    grid = (B // bt,)

    mask3 = mask.reshape(B, 1, L).astype(jnp.float32)
    prepared = _prepare_params(params)

    seq_spec = pl.BlockSpec((bt, L, H), lambda g: (g, 0, 0))
    mask_spec = pl.BlockSpec((bt, 1, L), lambda g: (g, 0, 0))

    def rep_spec(arr):
        zeros = (0,) * arr.ndim
        return pl.BlockSpec(arr.shape, lambda g, _z=zeros: _z)

    kernel = functools.partial(_i_s_block_kernel, n_heads, head_dim, bt)

    out_i, out_s = pl.pallas_call(
        kernel,
        out_shape=(jax.ShapeDtypeStruct((B, L, H), jnp.float32),
                   jax.ShapeDtypeStruct((B, L, H), jnp.float32)),
        grid_spec=pltpu.PrefetchScalarGridSpec(
            num_scalar_prefetch=0,
            grid=grid,
            in_specs=[mask_spec, seq_spec, seq_spec] + [rep_spec(p) for p in prepared],
            out_specs=[seq_spec, seq_spec],
        ),
        compiler_params=pltpu.CompilerParams(
            dimension_semantics=("parallel",)),
    )(mask3, intent, slot, *prepared)
    return out_i, out_s


# ----------------------------- pure-JAX reference (f32, faithful) --------------


def i_s_block_reference(intent, slot, mask, p, n_heads):
    B, L, H = intent.shape
    hd = H // n_heads
    neg = (1.0 - mask)[:, None, None, :] * -10000.0  # (B,1,1,L)

    def ln(x, g, b, eps=1e-5):
        m = jnp.mean(x, -1, keepdims=True)
        v = jnp.mean((x - m) ** 2, -1, keepdims=True)
        return (x - m) / jnp.sqrt(v + eps) * g + b

    def lin(x, W, b):
        return x @ W + b

    q = lin(intent, p["attn_w"][0], p["attn_b"][0])
    k = lin(slot, p["attn_w"][1], p["attn_b"][1])
    v = lin(slot, p["attn_w"][2], p["attn_b"][2])
    q_s = lin(slot, p["attn_w"][3], p["attn_b"][3])
    k_s = lin(intent, p["attn_w"][4], p["attn_b"][4])
    v_s = lin(intent, p["attn_w"][5], p["attn_b"][5])

    def mha(qm, km, vm):
        qh = qm.reshape(B, L, n_heads, hd).transpose(0, 2, 1, 3)
        kh = km.reshape(B, L, n_heads, hd).transpose(0, 2, 1, 3)
        vh = vm.reshape(B, L, n_heads, hd).transpose(0, 2, 1, 3)
        s = jnp.einsum("bhqd,bhkd->bhqk", qh, kh) / jnp.sqrt(jnp.float32(hd)) + neg
        pr = jax.nn.softmax(s, -1)
        c = jnp.einsum("bhqk,bhkd->bhqd", pr, vh)
        return c.transpose(0, 2, 1, 3).reshape(B, L, H)

    ctx_i = mha(q, k, v)
    ctx_s = mha(q_s, k_s, v_s)

    hi = ln(lin(ctx_i, p["out_w"][0], p["out_b"][0]) + intent,
            p["out_ln_g"][0], p["out_ln_b"][0])
    hs = ln(lin(ctx_s, p["out_w"][1], p["out_b"][1]) + slot,
            p["out_ln_g"][1], p["out_ln_b"][1])

    hin = jnp.concatenate([hi, hs], -1)
    zero = jnp.zeros((B, 1, 2 * H), jnp.float32)
    h_left = jnp.concatenate([zero, hin[:, :-1]], 1)
    h_right = jnp.concatenate([hin[:, 1:], zero], 1)
    hcat = jnp.concatenate([hin, h_left, h_right], -1)

    h = jax.nn.relu(hcat @ p["ff_win"] + p["ff_bin"])
    h = h @ p["ff_wout"] + p["ff_bout"]

    out_i = ln(h + hi, p["ff_ln_g"][0], p["ff_ln_b"][0])
    out_s = ln(h + hs, p["ff_ln_g"][1], p["ff_ln_b"][1])
    return out_i, out_s


# ----------------------------- main --------------------------------------------


def init_params(key, H):
    ks = jax.random.split(key, 12)

    def w(k, shape, scale=0.1):
        return (scale * jax.random.normal(k, shape)).astype(jnp.float32)

    return dict(
        attn_w=w(ks[0], (6, H, H)),          # query, key, value, query_slot, key_slot, value_slot
        attn_b=w(ks[1], (6, 1, H)),
        out_w=w(ks[2], (2, H, H)),           # I_Out.dense, S_Out.dense
        out_b=w(ks[3], (2, 1, H)),
        out_ln_g=1.0 + w(ks[4], (2, 1, H), 0.05),
        out_ln_b=w(ks[5], (2, 1, H), 0.05),
        ff_win=w(ks[6], (6 * H, H)),         # Intermediate_I_S.dense_in
        ff_bin=w(ks[7], (1, H)),
        ff_wout=w(ks[8], (H, H)),            # Intermediate_I_S.dense_out
        ff_bout=w(ks[9], (1, H)),
        ff_ln_g=1.0 + w(ks[10], (2, 1, H), 0.05),
        ff_ln_b=w(ks[11], (2, 1, H), 0.05),
    )


if __name__ == "__main__":
    B, L, H, n_heads = 2, 8, 32, 4

    key = jax.random.PRNGKey(0)
    k_i, k_s, k_p = jax.random.split(key, 3)
    intent = jax.random.normal(k_i, (B, L, H), jnp.float32)
    slot = jax.random.normal(k_s, (B, L, H), jnp.float32)
    # valid-length mask: batch 0 fully valid, batch 1 has 6 valid positions
    lens = jnp.array([L, 6])
    mask = (jnp.arange(L)[None, :] < lens[:, None]).astype(jnp.float32)

    params = init_params(k_p, H)

    out_i, out_s = i_s_block(intent, slot, mask, params, n_heads)
    jax.block_until_ready((out_i, out_s))

    ref_i, ref_s = i_s_block_reference(intent, slot, mask, params, n_heads)
    # Tolerance accounts for bf16 MXU operands (per perf review); structural
    # bugs (mask / shift / bias / residual errors) produce O(0.1-1) deviations.
    assert jnp.allclose(out_i, ref_i, rtol=5e-2, atol=5e-2), "intent branch mismatch"
    assert jnp.allclose(out_s, ref_s, rtol=5e-2, atol=5e-2), "slot branch mismatch"

    print("KERNEL_OK")
</pallas_src>

<mosaic_0001>
module attributes {stable_mosaic.version = 11 : i64} {
  func.func @_i_s_block_kernel(%arg0: i32, %arg1: memref<1x1x8xf32, #tpu.memory_space<vmem>>, %arg2: memref<1x8x32xf32, #tpu.memory_space<vmem>>, %arg3: memref<1x8x32xf32, #tpu.memory_space<vmem>>, %arg4: memref<32x96xbf16, #tpu.memory_space<vmem>>, %arg5: memref<1x96xf32, #tpu.memory_space<vmem>>, %arg6: memref<32x96xbf16, #tpu.memory_space<vmem>>, %arg7: memref<1x96xf32, #tpu.memory_space<vmem>>, %arg8: memref<2x32x32xbf16, #tpu.memory_space<vmem>>, %arg9: memref<2x1x32xf32, #tpu.memory_space<vmem>>, %arg10: memref<2x1x32xf32, #tpu.memory_space<vmem>>, %arg11: memref<2x1x32xf32, #tpu.memory_space<vmem>>, %arg12: memref<32x96xbf16, #tpu.memory_space<vmem>>, %arg13: memref<32x96xbf16, #tpu.memory_space<vmem>>, %arg14: memref<1x32xf32, #tpu.memory_space<vmem>>, %arg15: memref<32x32xbf16, #tpu.memory_space<vmem>>, %arg16: memref<1x32xf32, #tpu.memory_space<vmem>>, %arg17: memref<2x1x32xf32, #tpu.memory_space<vmem>>, %arg18: memref<2x1x32xf32, #tpu.memory_space<vmem>>, %arg19: memref<1x8x32xf32, #tpu.memory_space<vmem>>, %arg20: memref<1x8x32xf32, #tpu.memory_space<vmem>>) attributes {dimension_semantics = [#tpu.dimension_semantics<parallel>], iteration_bounds = array<i64: 2>, scalar_prefetch = 0 : i64, scratch_operands = 0 : i64, tpu.core_type = #tpu.core_type<tc>, window_params = [{transform_indices = @transform_0, window_bounds = array<i64: 1, 1, 8>}, {transform_indices = @transform_1, window_bounds = array<i64: 1, 8, 32>}, {transform_indices = @transform_2, window_bounds = array<i64: 1, 8, 32>}, {pipeline_mode = #tpu.pipeline_mode<synchronous>, transform_indices = @transform_3, window_bounds = array<i64: 32, 96>}, {pipeline_mode = #tpu.pipeline_mode<synchronous>, transform_indices = @transform_4, window_bounds = array<i64: 1, 96>}, {pipeline_mode = #tpu.pipeline_mode<synchronous>, transform_indices = @transform_5, window_bounds = array<i64: 32, 96>}, {pipeline_mode = #tpu.pipeline_mode<synchronous>, transform_indices = @transform_6, window_bounds = array<i64: 1, 96>}, {pipeline_mode = #tpu.pipeline_mode<synchronous>, transform_indices = @transform_7, window_bounds = array<i64: 2, 32, 32>}, {pipeline_mode = #tpu.pipeline_mode<synchronous>, transform_indices = @transform_8, window_bounds = array<i64: 2, 1, 32>}, {pipeline_mode = #tpu.pipeline_mode<synchronous>, transform_indices = @transform_9, window_bounds = array<i64: 2, 1, 32>}, {pipeline_mode = #tpu.pipeline_mode<synchronous>, transform_indices = @transform_10, window_bounds = array<i64: 2, 1, 32>}, {pipeline_mode = #tpu.pipeline_mode<synchronous>, transform_indices = @transform_11, window_bounds = array<i64: 32, 96>}, {pipeline_mode = #tpu.pipeline_mode<synchronous>, transform_indices = @transform_12, window_bounds = array<i64: 32, 96>}, {pipeline_mode = #tpu.pipeline_mode<synchronous>, transform_indices = @transform_13, window_bounds = array<i64: 1, 32>}, {pipeline_mode = #tpu.pipeline_mode<synchronous>, transform_indices = @transform_14, window_bounds = array<i64: 32, 32>}, {pipeline_mode = #tpu.pipeline_mode<synchronous>, transform_indices = @transform_15, window_bounds = array<i64: 1, 32>}, {pipeline_mode = #tpu.pipeline_mode<synchronous>, transform_indices = @transform_16, window_bounds = array<i64: 2, 1, 32>}, {pipeline_mode = #tpu.pipeline_mode<synchronous>, transform_indices = @transform_17, window_bounds = array<i64: 2, 1, 32>}, {transform_indices = @transform_18, window_bounds = array<i64: 1, 8, 32>}, {transform_indices = @transform_19, window_bounds = array<i64: 1, 8, 32>}]} {
    %c0 = arith.constant 0 : index
    %c0_0 = arith.constant 0 : index
    %0 = vector.load %arg4[%c0, %c0_0] : memref<32x96xbf16, #tpu.memory_space<vmem>>, vector<32x96xbf16>
    %c0_1 = arith.constant 0 : index
    %c0_2 = arith.constant 0 : index
    %1 = vector.load %arg6[%c0_1, %c0_2] : memref<32x96xbf16, #tpu.memory_space<vmem>>, vector<32x96xbf16>
    %c0_3 = arith.constant 0 : index
    %c0_4 = arith.constant 0 : index
    %c0_5 = arith.constant 0 : index
    %2 = vector.load %arg8[%c0_3, %c0_4, %c0_5] : memref<2x32x32xbf16, #tpu.memory_space<vmem>>, vector<1x32x32xbf16>
    %3 = vector.shape_cast %2 : vector<1x32x32xbf16> to vector<32x32xbf16>
    %c1 = arith.constant 1 : index
    %c0_6 = arith.constant 0 : index
    %c0_7 = arith.constant 0 : index
    %4 = vector.load %arg8[%c1, %c0_6, %c0_7] : memref<2x32x32xbf16, #tpu.memory_space<vmem>>, vector<1x32x32xbf16>
    %5 = vector.shape_cast %4 : vector<1x32x32xbf16> to vector<32x32xbf16>
    %c0_8 = arith.constant 0 : index
    %c0_9 = arith.constant 0 : index
    %6 = vector.load %arg12[%c0_8, %c0_9] : memref<32x96xbf16, #tpu.memory_space<vmem>>, vector<32x96xbf16>
    %c0_10 = arith.constant 0 : index
    %c0_11 = arith.constant 0 : index
    %7 = vector.load %arg13[%c0_10, %c0_11] : memref<32x96xbf16, #tpu.memory_space<vmem>>, vector<32x96xbf16>
    %c0_12 = arith.constant 0 : index
    %c0_13 = arith.constant 0 : index
    %8 = vector.load %arg15[%c0_12, %c0_13] : memref<32x32xbf16, #tpu.memory_space<vmem>>, vector<32x32xbf16>
    %cst = arith.constant 0.000000e+00 : f32
    %9 = vector.broadcast %cst : f32 to vector<1x32xf32>
    %c0_14 = arith.constant 0 : index
    %c0_15 = arith.constant 0 : index
    %c0_16 = arith.constant 0 : index
    %10 = vector.load %arg2[%c0_14, %c0_15, %c0_16] : memref<1x8x32xf32, #tpu.memory_space<vmem>>, vector<1x8x32xf32>
    %11 = vector.shape_cast %10 : vector<1x8x32xf32> to vector<8x32xf32>
    %c0_17 = arith.constant 0 : index
    %c0_18 = arith.constant 0 : index
    %c0_19 = arith.constant 0 : index
    %12 = vector.load %arg3[%c0_17, %c0_18, %c0_19] : memref<1x8x32xf32, #tpu.memory_space<vmem>>, vector<1x8x32xf32>
    %13 = vector.shape_cast %12 : vector<1x8x32xf32> to vector<8x32xf32>
    %c0_20 = arith.constant 0 : index
    %c0_21 = arith.constant 0 : index
    %c0_22 = arith.constant 0 : index
    %14 = vector.load %arg1[%c0_20, %c0_21, %c0_22] : memref<1x1x8xf32, #tpu.memory_space<vmem>>, vector<1x1x8xf32>
    %15 = vector.shape_cast %14 : vector<1x1x8xf32> to vector<1x8xf32>
    %cst_23 = arith.constant 1.000000e+00 : f32
    %16 = vector.broadcast %cst_23 : f32 to vector<1x8xf32>
    %17 = arith.subf %16, %15 : vector<1x8xf32>
    %cst_24 = arith.constant -1.000000e+04 : f32
    %18 = vector.broadcast %cst_24 : f32 to vector<1x8xf32>
    %19 = arith.mulf %17, %18 : vector<1x8xf32>
    %20 = arith.truncf %11 : vector<8x32xf32> to vector<8x32xbf16>
    %cst_25 = arith.constant dense<0.000000e+00> : vector<8x96xf32>
    %21 = tpu.matmul %20, %0, %cst_25 {dimension_numbers = #tpu.dot_dimension_numbers<[1], [0], [0], [1], [0, 0, 1, 1], [], []>} : vector<8x32xbf16>, vector<32x96xbf16>, vector<8x96xf32> -> vector<8x96xf32>
    %c0_26 = arith.constant 0 : index
    %c0_27 = arith.constant 0 : index
    %22 = vector.load %arg5[%c0_26, %c0_27] : memref<1x96xf32, #tpu.memory_space<vmem>>, vector<1x96xf32>
    %23 = vector.broadcast %22 : vector<1x96xf32> to vector<8x96xf32>
    %24 = arith.addf %21, %23 : vector<8x96xf32>
    %25 = arith.truncf %13 : vector<8x32xf32> to vector<8x32xbf16>
    %cst_28 = arith.constant dense<0.000000e+00> : vector<8x96xf32>
    %26 = tpu.matmul %25, %1, %cst_28 {dimension_numbers = #tpu.dot_dimension_numbers<[1], [0], [0], [1], [0, 0, 1, 1], [], []>} : vector<8x32xbf16>, vector<32x96xbf16>, vector<8x96xf32> -> vector<8x96xf32>
    %c0_29 = arith.constant 0 : index
    %c0_30 = arith.constant 0 : index
    %27 = vector.load %arg7[%c0_29, %c0_30] : memref<1x96xf32, #tpu.memory_space<vmem>>, vector<1x96xf32>
    %28 = vector.broadcast %27 : vector<1x96xf32> to vector<8x96xf32>
    %29 = arith.addf %26, %28 : vector<8x96xf32>
    %30 = vector.extract_strided_slice %24 {offsets = [0, 0], sizes = [8, 32], strides = [1, 1]} : vector<8x96xf32> to vector<8x32xf32>
    %cst_31 = arith.constant 0.353553385 : f32
    %31 = vector.broadcast %cst_31 : f32 to vector<8x32xf32>
    %32 = arith.mulf %30, %31 : vector<8x32xf32>
    %33 = vector.extract_strided_slice %24 {offsets = [0, 32], sizes = [8, 32], strides = [1, 1]} : vector<8x96xf32> to vector<8x32xf32>
    %34 = vector.extract_strided_slice %24 {offsets = [0, 64], sizes = [8, 32], strides = [1, 1]} : vector<8x96xf32> to vector<8x32xf32>
    %35 = vector.extract_strided_slice %29 {offsets = [0, 0], sizes = [8, 32], strides = [1, 1]} : vector<8x96xf32> to vector<8x32xf32>
    %36 = vector.extract_strided_slice %29 {offsets = [0, 32], sizes = [8, 32], strides = [1, 1]} : vector<8x96xf32> to vector<8x32xf32>
    %37 = vector.extract_strided_slice %29 {offsets = [0, 64], sizes = [8, 32], strides = [1, 1]} : vector<8x96xf32> to vector<8x32xf32>
    %cst_32 = arith.constant 0.353553385 : f32
    %38 = vector.broadcast %cst_32 : f32 to vector<8x32xf32>
    %39 = arith.mulf %37, %38 : vector<8x32xf32>
    %40 = arith.truncf %32 : vector<8x32xf32> to vector<8x32xbf16>
    %41 = arith.truncf %35 : vector<8x32xf32> to vector<8x32xbf16>
    %42 = arith.truncf %36 : vector<8x32xf32> to vector<8x32xbf16>
    %43 = vector.extract_strided_slice %40 {offsets = [0, 0], sizes = [8, 8], strides = [1, 1]} : vector<8x32xbf16> to vector<8x8xbf16>
    %44 = vector.extract_strided_slice %41 {offsets = [0, 0], sizes = [8, 8], strides = [1, 1]} : vector<8x32xbf16> to vector<8x8xbf16>
    %cst_33 = arith.constant dense<0.000000e+00> : vector<8x8xf32>
    %45 = tpu.matmul %43, %44, %cst_33 {dimension_numbers = #tpu.dot_dimension_numbers<[1], [1], [0], [0], [0, 0, 1, 0], [], []>} : vector<8x8xbf16>, vector<8x8xbf16>, vector<8x8xf32> -> vector<8x8xf32>
    %46 = vector.broadcast %19 : vector<1x8xf32> to vector<8x8xf32>
    %47 = arith.addf %45, %46 : vector<8x8xf32>
    %cst_34 = arith.constant dense<0xFF800000> : vector<8xf32>
    %48 = vector.multi_reduction <maximumf>, %47, %cst_34 [1] : vector<8x8xf32> to vector<8xf32>
    %49 = vector.shape_cast %48 : vector<8xf32> to vector<8x1xf32>
    %50 = vector.broadcast %49 : vector<8x1xf32> to vector<8x8xf32>
    %51 = arith.subf %47, %50 : vector<8x8xf32>
    %52 = math.exp %51 : vector<8x8xf32>
    %cst_35 = arith.constant dense<0.000000e+00> : vector<8xf32>
    %53 = vector.multi_reduction <add>, %52, %cst_35 [1] : vector<8x8xf32> to vector<8xf32>
    %54 = vector.shape_cast %53 : vector<8xf32> to vector<8x1xf32>
    %55 = tpu.reciprocal %54 {approx = true} : vector<8x1xf32> -> vector<8x1xf32>
    %56 = vector.broadcast %55 : vector<8x1xf32> to vector<8x8xf32>
    %57 = arith.mulf %52, %56 : vector<8x8xf32>
    %58 = vector.extract_strided_slice %42 {offsets = [0, 0], sizes = [8, 8], strides = [1, 1]} : vector<8x32xbf16> to vector<8x8xbf16>
    %59 = arith.truncf %57 : vector<8x8xf32> to vector<8x8xbf16>
    %cst_36 = arith.constant dense<0.000000e+00> : vector<8x8xf32>
    %60 = tpu.matmul %59, %58, %cst_36 {dimension_numbers = #tpu.dot_dimension_numbers<[1], [0], [0], [1], [0, 0, 1, 1], [], []>} : vector<8x8xbf16>, vector<8x8xbf16>, vector<8x8xf32> -> vector<8x8xf32>
    %61 = vector.extract_strided_slice %3 {offsets = [0, 0], sizes = [8, 32], strides = [1, 1]} : vector<32x32xbf16> to vector<8x32xbf16>
    %62 = arith.truncf %60 : vector<8x8xf32> to vector<8x8xbf16>
    %cst_37 = arith.constant dense<0.000000e+00> : vector<8x32xf32>
    %63 = tpu.matmul %62, %61, %cst_37 {dimension_numbers = #tpu.dot_dimension_numbers<[1], [0], [0], [1], [0, 0, 1, 1], [], []>} : vector<8x8xbf16>, vector<8x32xbf16>, vector<8x32xf32> -> vector<8x32xf32>
    %64 = vector.extract_strided_slice %40 {offsets = [0, 8], sizes = [8, 8], strides = [1, 1]} : vector<8x32xbf16> to vector<8x8xbf16>
    %65 = vector.extract_strided_slice %41 {offsets = [0, 8], sizes = [8, 8], strides = [1, 1]} : vector<8x32xbf16> to vector<8x8xbf16>
    %cst_38 = arith.constant dense<0.000000e+00> : vector<8x8xf32>
    %66 = tpu.matmul %64, %65, %cst_38 {dimension_numbers = #tpu.dot_dimension_numbers<[1], [1], [0], [0], [0, 0, 1, 0], [], []>} : vector<8x8xbf16>, vector<8x8xbf16>, vector<8x8xf32> -> vector<8x8xf32>
    %67 = vector.broadcast %19 : vector<1x8xf32> to vector<8x8xf32>
    %68 = arith.addf %66, %67 : vector<8x8xf32>
    %cst_39 = arith.constant dense<0xFF800000> : vector<8xf32>
    %69 = vector.multi_reduction <maximumf>, %68, %cst_39 [1] : vector<8x8xf32> to vector<8xf32>
    %70 = vector.shape_cast %69 : vector<8xf32> to vector<8x1xf32>
    %71 = vector.broadcast %70 : vector<8x1xf32> to vector<8x8xf32>
    %72 = arith.subf %68, %71 : vector<8x8xf32>
    %73 = math.exp %72 : vector<8x8xf32>
    %cst_40 = arith.constant dense<0.000000e+00> : vector<8xf32>
    %74 = vector.multi_reduction <add>, %73, %cst_40 [1] : vector<8x8xf32> to vector<8xf32>
    %75 = vector.shape_cast %74 : vector<8xf32> to vector<8x1xf32>
    %76 = tpu.reciprocal %75 {approx = true} : vector<8x1xf32> -> vector<8x1xf32>
    %77 = vector.broadcast %76 : vector<8x1xf32> to vector<8x8xf32>
    %78 = arith.mulf %73, %77 : vector<8x8xf32>
    %79 = vector.extract_strided_slice %42 {offsets = [0, 8], sizes = [8, 8], strides = [1, 1]} : vector<8x32xbf16> to vector<8x8xbf16>
    %80 = arith.truncf %78 : vector<8x8xf32> to vector<8x8xbf16>
    %cst_41 = arith.constant dense<0.000000e+00> : vector<8x8xf32>
    %81 = tpu.matmul %80, %79, %cst_41 {dimension_numbers = #tpu.dot_dimension_numbers<[1], [0], [0], [1], [0, 0, 1, 1], [], []>} : vector<8x8xbf16>, vector<8x8xbf16>, vector<8x8xf32> -> vector<8x8xf32>
    %82 = vector.extract_strided_slice %3 {offsets = [8, 0], sizes = [8, 32], strides = [1, 1]} : vector<32x32xbf16> to vector<8x32xbf16>
    %83 = arith.truncf %81 : vector<8x8xf32> to vector<8x8xbf16>
    %cst_42 = arith.constant dense<0.000000e+00> : vector<8x32xf32>
    %84 = tpu.matmul %83, %82, %cst_42 {dimension_numbers = #tpu.dot_dimension_numbers<[1], [0], [0], [1], [0, 0, 1, 1], [], []>} : vector<8x8xbf16>, vector<8x32xbf16>, vector<8x32xf32> -> vector<8x32xf32>
    %85 = arith.addf %63, %84 : vector<8x32xf32>
    %86 = vector.extract_strided_slice %40 {offsets = [0, 16], sizes = [8, 8], strides = [1, 1]} : vector<8x32xbf16> to vector<8x8xbf16>
    %87 = vector.extract_strided_slice %41 {offsets = [0, 16], sizes = [8, 8], strides = [1, 1]} : vector<8x32xbf16> to vector<8x8xbf16>
    %cst_43 = arith.constant dense<0.000000e+00> : vector<8x8xf32>
    %88 = tpu.matmul %86, %87, %cst_43 {dimension_numbers = #tpu.dot_dimension_numbers<[1], [1], [0], [0], [0, 0, 1, 0], [], []>} : vector<8x8xbf16>, vector<8x8xbf16>, vector<8x8xf32> -> vector<8x8xf32>
    %89 = vector.broadcast %19 : vector<1x8xf32> to vector<8x8xf32>
    %90 = arith.addf %88, %89 : vector<8x8xf32>
    %cst_44 = arith.constant dense<0xFF800000> : vector<8xf32>
    %91 = vector.multi_reduction <maximumf>, %90, %cst_44 [1] : vector<8x8xf32> to vector<8xf32>
    %92 = vector.shape_cast %91 : vector<8xf32> to vector<8x1xf32>
    %93 = vector.broadcast %92 : vector<8x1xf32> to vector<8x8xf32>
    %94 = arith.subf %90, %93 : vector<8x8xf32>
    %95 = math.exp %94 : vector<8x8xf32>
    %cst_45 = arith.constant dense<0.000000e+00> : vector<8xf32>
    %96 = vector.multi_reduction <add>, %95, %cst_45 [1] : vector<8x8xf32> to vector<8xf32>
    %97 = vector.shape_cast %96 : vector<8xf32> to vector<8x1xf32>
    %98 = tpu.reciprocal %97 {approx = true} : vector<8x1xf32> -> vector<8x1xf32>
    %99 = vector.broadcast %98 : vector<8x1xf32> to vector<8x8xf32>
    %100 = arith.mulf %95, %99 : vector<8x8xf32>
    %101 = vector.extract_strided_slice %42 {offsets = [0, 16], sizes = [8, 8], strides = [1, 1]} : vector<8x32xbf16> to vector<8x8xbf16>
    %102 = arith.truncf %100 : vector<8x8xf32> to vector<8x8xbf16>
    %cst_46 = arith.constant dense<0.000000e+00> : vector<8x8xf32>
    %103 = tpu.matmul %102, %101, %cst_46 {dimension_numbers = #tpu.dot_dimension_numbers<[1], [0], [0], [1], [0, 0, 1, 1], [], []>} : vector<8x8xbf16>, vector<8x8xbf16>, vector<8x8xf32> -> vector<8x8xf32>
    %104 = vector.extract_strided_slice %3 {offsets = [16, 0], sizes = [8, 32], strides = [1, 1]} : vector<32x32xbf16> to vector<8x32xbf16>
    %105 = arith.truncf %103 : vector<8x8xf32> to vector<8x8xbf16>
    %cst_47 = arith.constant dense<0.000000e+00> : vector<8x32xf32>
    %106 = tpu.matmul %105, %104, %cst_47 {dimension_numbers = #tpu.dot_dimension_numbers<[1], [0], [0], [1], [0, 0, 1, 1], [], []>} : vector<8x8xbf16>, vector<8x32xbf16>, vector<8x32xf32> -> vector<8x32xf32>
    %107 = arith.addf %85, %106 : vector<8x32xf32>
    %108 = vector.extract_strided_slice %40 {offsets = [0, 24], sizes = [8, 8], strides = [1, 1]} : vector<8x32xbf16> to vector<8x8xbf16>
    %109 = vector.extract_strided_slice %41 {offsets = [0, 24], sizes = [8, 8], strides = [1, 1]} : vector<8x32xbf16> to vector<8x8xbf16>
    %cst_48 = arith.constant dense<0.000000e+00> : vector<8x8xf32>
    %110 = tpu.matmul %108, %109, %cst_48 {dimension_numbers = #tpu.dot_dimension_numbers<[1], [1], [0], [0], [0, 0, 1, 0], [], []>} : vector<8x8xbf16>, vector<8x8xbf16>, vector<8x8xf32> -> vector<8x8xf32>
    %111 = vector.broadcast %19 : vector<1x8xf32> to vector<8x8xf32>
    %112 = arith.addf %110, %111 : vector<8x8xf32>
    %cst_49 = arith.constant dense<0xFF800000> : vector<8xf32>
    %113 = vector.multi_reduction <maximumf>, %112, %cst_49 [1] : vector<8x8xf32> to vector<8xf32>
    %114 = vector.shape_cast %113 : vector<8xf32> to vector<8x1xf32>
    %115 = vector.broadcast %114 : vector<8x1xf32> to vector<8x8xf32>
    %116 = arith.subf %112, %115 : vector<8x8xf32>
    %117 = math.exp %116 : vector<8x8xf32>
    %cst_50 = arith.constant dense<0.000000e+00> : vector<8xf32>
    %118 = vector.multi_reduction <add>, %117, %cst_50 [1] : vector<8x8xf32> to vector<8xf32>
    %119 = vector.shape_cast %118 : vector<8xf32> to vector<8x1xf32>
    %120 = tpu.reciprocal %119 {approx = true} : vector<8x1xf32> -> vector<8x1xf32>
    %121 = vector.broadcast %120 : vector<8x1xf32> to vector<8x8xf32>
    %122 = arith.mulf %117, %121 : vector<8x8xf32>
    %123 = vector.extract_strided_slice %42 {offsets = [0, 24], sizes = [8, 8], strides = [1, 1]} : vector<8x32xbf16> to vector<8x8xbf16>
    %124 = arith.truncf %122 : vector<8x8xf32> to vector<8x8xbf16>
    %cst_51 = arith.constant dense<0.000000e+00> : vector<8x8xf32>
    %125 = tpu.matmul %124, %123, %cst_51 {dimension_numbers = #tpu.dot_dimension_numbers<[1], [0], [0], [1], [0, 0, 1, 1], [], []>} : vector<8x8xbf16>, vector<8x8xbf16>, vector<8x8xf32> -> vector<8x8xf32>
    %126 = vector.extract_strided_slice %3 {offsets = [24, 0], sizes = [8, 32], strides = [1, 1]} : vector<32x32xbf16> to vector<8x32xbf16>
    %127 = arith.truncf %125 : vector<8x8xf32> to vector<8x8xbf16>
    %cst_52 = arith.constant dense<0.000000e+00> : vector<8x32xf32>
    %128 = tpu.matmul %127, %126, %cst_52 {dimension_numbers = #tpu.dot_dimension_numbers<[1], [0], [0], [1], [0, 0, 1, 1], [], []>} : vector<8x8xbf16>, vector<8x32xbf16>, vector<8x32xf32> -> vector<8x32xf32>
    %129 = arith.addf %107, %128 : vector<8x32xf32>
    %c0_53 = arith.constant 0 : index
    %c0_54 = arith.constant 0 : index
    %c0_55 = arith.constant 0 : index
    %130 = vector.load %arg9[%c0_53, %c0_54, %c0_55] : memref<2x1x32xf32, #tpu.memory_space<vmem>>, vector<1x1x32xf32>
    %131 = vector.shape_cast %130 : vector<1x1x32xf32> to vector<1x32xf32>
    %132 = vector.broadcast %131 : vector<1x32xf32> to vector<8x32xf32>
    %133 = arith.addf %129, %132 : vector<8x32xf32>
    %134 = arith.truncf %39 : vector<8x32xf32> to vector<8x32xbf16>
    %135 = arith.truncf %33 : vector<8x32xf32> to vector<8x32xbf16>
    %136 = arith.truncf %34 : vector<8x32xf32> to vector<8x32xbf16>
    %137 = vector.extract_strided_slice %134 {offsets = [0, 0], sizes = [8, 8], strides = [1, 1]} : vector<8x32xbf16> to vector<8x8xbf16>
    %138 = vector.extract_strided_slice %135 {offsets = [0, 0], sizes = [8, 8], strides = [1, 1]} : vector<8x32xbf16> to vector<8x8xbf16>
    %cst_56 = arith.constant dense<0.000000e+00> : vector<8x8xf32>
    %139 = tpu.matmul %137, %138, %cst_56 {dimension_numbers = #tpu.dot_dimension_numbers<[1], [1], [0], [0], [0, 0, 1, 0], [], []>} : vector<8x8xbf16>, vector<8x8xbf16>, vector<8x8xf32> -> vector<8x8xf32>
    %140 = vector.broadcast %19 : vector<1x8xf32> to vector<8x8xf32>
    %141 = arith.addf %139, %140 : vector<8x8xf32>
    %cst_57 = arith.constant dense<0xFF800000> : vector<8xf32>
    %142 = vector.multi_reduction <maximumf>, %141, %cst_57 [1] : vector<8x8xf32> to vector<8xf32>
    %143 = vector.shape_cast %142 : vector<8xf32> to vector<8x1xf32>
    %144 = vector.broadcast %143 : vector<8x1xf32> to vector<8x8xf32>
    %145 = arith.subf %141, %144 : vector<8x8xf32>
    %146 = math.exp %145 : vector<8x8xf32>
    %cst_58 = arith.constant dense<0.000000e+00> : vector<8xf32>
    %147 = vector.multi_reduction <add>, %146, %cst_58 [1] : vector<8x8xf32> to vector<8xf32>
    %148 = vector.shape_cast %147 : vector<8xf32> to vector<8x1xf32>
    %149 = tpu.reciprocal %148 {approx = true} : vector<8x1xf32> -> vector<8x1xf32>
    %150 = vector.broadcast %149 : vector<8x1xf32> to vector<8x8xf32>
    %151 = arith.mulf %146, %150 : vector<8x8xf32>
    %152 = vector.extract_strided_slice %136 {offsets = [0, 0], sizes = [8, 8], strides = [1, 1]} : vector<8x32xbf16> to vector<8x8xbf16>
    %153 = arith.truncf %151 : vector<8x8xf32> to vector<8x8xbf16>
    %cst_59 = arith.constant dense<0.000000e+00> : vector<8x8xf32>
    %154 = tpu.matmul %153, %152, %cst_59 {dimension_numbers = #tpu.dot_dimension_numbers<[1], [0], [0], [1], [0, 0, 1, 1], [], []>} : vector<8x8xbf16>, vector<8x8xbf16>, vector<8x8xf32> -> vector<8x8xf32>
    %155 = vector.extract_strided_slice %5 {offsets = [0, 0], sizes = [8, 32], strides = [1, 1]} : vector<32x32xbf16> to vector<8x32xbf16>
    %156 = arith.truncf %154 : vector<8x8xf32> to vector<8x8xbf16>
    %cst_60 = arith.constant dense<0.000000e+00> : vector<8x32xf32>
    %157 = tpu.matmul %156, %155, %cst_60 {dimension_numbers = #tpu.dot_dimension_numbers<[1], [0], [0], [1], [0, 0, 1, 1], [], []>} : vector<8x8xbf16>, vector<8x32xbf16>, vector<8x32xf32> -> vector<8x32xf32>
    %158 = vector.extract_strided_slice %134 {offsets = [0, 8], sizes = [8, 8], strides = [1, 1]} : vector<8x32xbf16> to vector<8x8xbf16>
    %159 = vector.extract_strided_slice %135 {offsets = [0, 8], sizes = [8, 8], strides = [1, 1]} : vector<8x32xbf16> to vector<8x8xbf16>
    %cst_61 = arith.constant dense<0.000000e+00> : vector<8x8xf32>
    %160 = tpu.matmul %158, %159, %cst_61 {dimension_numbers = #tpu.dot_dimension_numbers<[1], [1], [0], [0], [0, 0, 1, 0], [], []>} : vector<8x8xbf16>, vector<8x8xbf16>, vector<8x8xf32> -> vector<8x8xf32>
    %161 = vector.broadcast %19 : vector<1x8xf32> to vector<8x8xf32>
    %162 = arith.addf %160, %161 : vector<8x8xf32>
    %cst_62 = arith.constant dense<0xFF800000> : vector<8xf32>
    %163 = vector.multi_reduction <maximumf>, %162, %cst_62 [1] : vector<8x8xf32> to vector<8xf32>
    %164 = vector.shape_cast %163 : vector<8xf32> to vector<8x1xf32>
    %165 = vector.broadcast %164 : vector<8x1xf32> to vector<8x8xf32>
    %166 = arith.subf %162, %165 : vector<8x8xf32>
    %167 = math.exp %166 : vector<8x8xf32>
    %cst_63 = arith.constant dense<0.000000e+00> : vector<8xf32>
    %168 = vector.multi_reduction <add>, %167, %cst_63 [1] : vector<8x8xf32> to vector<8xf32>
    %169 = vector.shape_cast %168 : vector<8xf32> to vector<8x1xf32>
    %170 = tpu.reciprocal %169 {approx = true} : vector<8x1xf32> -> vector<8x1xf32>
    %171 = vector.broadcast %170 : vector<8x1xf32> to vector<8x8xf32>
    %172 = arith.mulf %167, %171 : vector<8x8xf32>
    %173 = vector.extract_strided_slice %136 {offsets = [0, 8], sizes = [8, 8], strides = [1, 1]} : vector<8x32xbf16> to vector<8x8xbf16>
    %174 = arith.truncf %172 : vector<8x8xf32> to vector<8x8xbf16>
    %cst_64 = arith.constant dense<0.000000e+00> : vector<8x8xf32>
    %175 = tpu.matmul %174, %173, %cst_64 {dimension_numbers = #tpu.dot_dimension_numbers<[1], [0], [0], [1], [0, 0, 1, 1], [], []>} : vector<8x8xbf16>, vector<8x8xbf16>, vector<8x8xf32> -> vector<8x8xf32>
    %176 = vector.extract_strided_slice %5 {offsets = [8, 0], sizes = [8, 32], strides = [1, 1]} : vector<32x32xbf16> to vector<8x32xbf16>
    %177 = arith.truncf %175 : vector<8x8xf32> to vector<8x8xbf16>
    %cst_65 = arith.constant dense<0.000000e+00> : vector<8x32xf32>
    %178 = tpu.matmul %177, %176, %cst_65 {dimension_numbers = #tpu.dot_dimension_numbers<[1], [0], [0], [1], [0, 0, 1, 1], [], []>} : vector<8x8xbf16>, vector<8x32xbf16>, vector<8x32xf32> -> vector<8x32xf32>
    %179 = arith.addf %157, %178 : vector<8x32xf32>
    %180 = vector.extract_strided_slice %134 {offsets = [0, 16], sizes = [8, 8], strides = [1, 1]} : vector<8x32xbf16> to vector<8x8xbf16>
    %181 = vector.extract_strided_slice %135 {offsets = [0, 16], sizes = [8, 8], strides = [1, 1]} : vector<8x32xbf16> to vector<8x8xbf16>
    %cst_66 = arith.constant dense<0.000000e+00> : vector<8x8xf32>
    %182 = tpu.matmul %180, %181, %cst_66 {dimension_numbers = #tpu.dot_dimension_numbers<[1], [1], [0], [0], [0, 0, 1, 0], [], []>} : vector<8x8xbf16>, vector<8x8xbf16>, vector<8x8xf32> -> vector<8x8xf32>
    %183 = vector.broadcast %19 : vector<1x8xf32> to vector<8x8xf32>
    %184 = arith.addf %182, %183 : vector<8x8xf32>
    %cst_67 = arith.constant dense<0xFF800000> : vector<8xf32>
    %185 = vector.multi_reduction <maximumf>, %184, %cst_67 [1] : vector<8x8xf32> to vector<8xf32>
    %186 = vector.shape_cast %185 : vector<8xf32> to vector<8x1xf32>
    %187 = vector.broadcast %186 : vector<8x1xf32> to vector<8x8xf32>
    %188 = arith.subf %184, %187 : vector<8x8xf32>
    %189 = math.exp %188 : vector<8x8xf32>
    %cst_68 = arith.constant dense<0.000000e+00> : vector<8xf32>
    %190 = vector.multi_reduction <add>, %189, %cst_68 [1] : vector<8x8xf32> to vector<8xf32>
    %191 = vector.shape_cast %190 : vector<8xf32> to vector<8x1xf32>
    %192 = tpu.reciprocal %191 {approx = true} : vector<8x1xf32> -> vector<8x1xf32>
    %193 = vector.broadcast %192 : vector<8x1xf32> to vector<8x8xf32>
    %194 = arith.mulf %189, %193 : vector<8x8xf32>
    %195 = vector.extract_strided_slice %136 {offsets = [0, 16], sizes = [8, 8], strides = [1, 1]} : vector<8x32xbf16> to vector<8x8xbf16>
    %196 = arith.truncf %194 : vector<8x8xf32> to vector<8x8xbf16>
    %cst_69 = arith.constant dense<0.000000e+00> : vector<8x8xf32>
    %197 = tpu.matmul %196, %195, %cst_69 {dimension_numbers = #tpu.dot_dimension_numbers<[1], [0], [0], [1], [0, 0, 1, 1], [], []>} : vector<8x8xbf16>, vector<8x8xbf16>, vector<8x8xf32> -> vector<8x8xf32>
    %198 = vector.extract_strided_slice %5 {offsets = [16, 0], sizes = [8, 32], strides = [1, 1]} : vector<32x32xbf16> to vector<8x32xbf16>
    %199 = arith.truncf %197 : vector<8x8xf32> to vector<8x8xbf16>
    %cst_70 = arith.constant dense<0.000000e+00> : vector<8x32xf32>
    %200 = tpu.matmul %199, %198, %cst_70 {dimension_numbers = #tpu.dot_dimension_numbers<[1], [0], [0], [1], [0, 0, 1, 1], [], []>} : vector<8x8xbf16>, vector<8x32xbf16>, vector<8x32xf32> -> vector<8x32xf32>
    %201 = arith.addf %179, %200 : vector<8x32xf32>
    %202 = vector.extract_strided_slice %134 {offsets = [0, 24], sizes = [8, 8], strides = [1, 1]} : vector<8x32xbf16> to vector<8x8xbf16>
    %203 = vector.extract_strided_slice %135 {offsets = [0, 24], sizes = [8, 8], strides = [1, 1]} : vector<8x32xbf16> to vector<8x8xbf16>
    %cst_71 = arith.constant dense<0.000000e+00> : vector<8x8xf32>
    %204 = tpu.matmul %202, %203, %cst_71 {dimension_numbers = #tpu.dot_dimension_numbers<[1], [1], [0], [0], [0, 0, 1, 0], [], []>} : vector<8x8xbf16>, vector<8x8xbf16>, vector<8x8xf32> -> vector<8x8xf32>
    %205 = vector.broadcast %19 : vector<1x8xf32> to vector<8x8xf32>
    %206 = arith.addf %204, %205 : vector<8x8xf32>
    %cst_72 = arith.constant dense<0xFF800000> : vector<8xf32>
    %207 = vector.multi_reduction <maximumf>, %206, %cst_72 [1] : vector<8x8xf32> to vector<8xf32>
    %208 = vector.shape_cast %207 : vector<8xf32> to vector<8x1xf32>
    %209 = vector.broadcast %208 : vector<8x1xf32> to vector<8x8xf32>
    %210 = arith.subf %206, %209 : vector<8x8xf32>
    %211 = math.exp %210 : vector<8x8xf32>
    %cst_73 = arith.constant dense<0.000000e+00> : vector<8xf32>
    %212 = vector.multi_reduction <add>, %211, %cst_73 [1] : vector<8x8xf32> to vector<8xf32>
    %213 = vector.shape_cast %212 : vector<8xf32> to vector<8x1xf32>
    %214 = tpu.reciprocal %213 {approx = true} : vector<8x1xf32> -> vector<8x1xf32>
    %215 = vector.broadcast %214 : vector<8x1xf32> to vector<8x8xf32>
    %216 = arith.mulf %211, %215 : vector<8x8xf32>
    %217 = vector.extract_strided_slice %136 {offsets = [0, 24], sizes = [8, 8], strides = [1, 1]} : vector<8x32xbf16> to vector<8x8xbf16>
    %218 = arith.truncf %216 : vector<8x8xf32> to vector<8x8xbf16>
    %cst_74 = arith.constant dense<0.000000e+00> : vector<8x8xf32>
    %219 = tpu.matmul %218, %217, %cst_74 {dimension_numbers = #tpu.dot_dimension_numbers<[1], [0], [0], [1], [0, 0, 1, 1], [], []>} : vector<8x8xbf16>, vector<8x8xbf16>, vector<8x8xf32> -> vector<8x8xf32>
    %220 = vector.extract_strided_slice %5 {offsets = [24, 0], sizes = [8, 32], strides = [1, 1]} : vector<32x32xbf16> to vector<8x32xbf16>
    %221 = arith.truncf %219 : vector<8x8xf32> to vector<8x8xbf16>
    %cst_75 = arith.constant dense<0.000000e+00> : vector<8x32xf32>
    %222 = tpu.matmul %221, %220, %cst_75 {dimension_numbers = #tpu.dot_dimension_numbers<[1], [0], [0], [1], [0, 0, 1, 1], [], []>} : vector<8x8xbf16>, vector<8x32xbf16>, vector<8x32xf32> -> vector<8x32xf32>
    %223 = arith.addf %201, %222 : vector<8x32xf32>
    %c1_76 = arith.constant 1 : index
    %c0_77 = arith.constant 0 : index
    %c0_78 = arith.constant 0 : index
    %224 = vector.load %arg9[%c1_76, %c0_77, %c0_78] : memref<2x1x32xf32, #tpu.memory_space<vmem>>, vector<1x1x32xf32>
    %225 = vector.shape_cast %224 : vector<1x1x32xf32> to vector<1x32xf32>
    %226 = vector.broadcast %225 : vector<1x32xf32> to vector<8x32xf32>
    %227 = arith.addf %223, %226 : vector<8x32xf32>
    %228 = arith.addf %133, %11 : vector<8x32xf32>
    %c0_79 = arith.constant 0 : index
    %c0_80 = arith.constant 0 : index
    %c0_81 = arith.constant 0 : index
    %229 = vector.load %arg10[%c0_79, %c0_80, %c0_81] : memref<2x1x32xf32, #tpu.memory_space<vmem>>, vector<1x1x32xf32>
    %230 = vector.shape_cast %229 : vector<1x1x32xf32> to vector<1x32xf32>
    %c0_82 = arith.constant 0 : index
    %c0_83 = arith.constant 0 : index
    %c0_84 = arith.constant 0 : index
    %231 = vector.load %arg11[%c0_82, %c0_83, %c0_84] : memref<2x1x32xf32, #tpu.memory_space<vmem>>, vector<1x1x32xf32>
    %232 = vector.shape_cast %231 : vector<1x1x32xf32> to vector<1x32xf32>
    %cst_85 = arith.constant dense<0.000000e+00> : vector<8xf32>
    %233 = vector.multi_reduction <add>, %228, %cst_85 [1] : vector<8x32xf32> to vector<8xf32>
    %234 = vector.shape_cast %233 : vector<8xf32> to vector<8x1xf32>
    %cst_86 = arith.constant 3.200000e+01 : f32
    %235 = vector.broadcast %cst_86 : f32 to vector<8x1xf32>
    %236 = arith.divf %234, %235 : vector<8x1xf32>
    %237 = vector.broadcast %236 : vector<8x1xf32> to vector<8x32xf32>
    %238 = arith.subf %228, %237 : vector<8x32xf32>
    %239 = arith.mulf %238, %238 : vector<8x32xf32>
    %cst_87 = arith.constant dense<0.000000e+00> : vector<8xf32>
    %240 = vector.multi_reduction <add>, %239, %cst_87 [1] : vector<8x32xf32> to vector<8xf32>
    %241 = vector.shape_cast %240 : vector<8xf32> to vector<8x1xf32>
    %cst_88 = arith.constant 3.200000e+01 : f32
    %242 = vector.broadcast %cst_88 : f32 to vector<8x1xf32>
    %243 = arith.divf %241, %242 : vector<8x1xf32>
    %244 = vector.broadcast %236 : vector<8x1xf32> to vector<8x32xf32>
    %245 = arith.subf %228, %244 : vector<8x32xf32>
    %cst_89 = arith.constant 9.99999974E-6 : f32
    %246 = vector.broadcast %cst_89 : f32 to vector<8x1xf32>
    %247 = arith.addf %243, %246 : vector<8x1xf32>
    %248 = math.rsqrt %247 : vector<8x1xf32>
    %249 = vector.broadcast %248 : vector<8x1xf32> to vector<8x32xf32>
    %250 = arith.mulf %245, %249 : vector<8x32xf32>
    %251 = vector.broadcast %230 : vector<1x32xf32> to vector<8x32xf32>
    %252 = arith.mulf %250, %251 : vector<8x32xf32>
    %253 = vector.broadcast %232 : vector<1x32xf32> to vector<8x32xf32>
    %254 = arith.addf %252, %253 : vector<8x32xf32>
    %255 = arith.addf %227, %13 : vector<8x32xf32>
    %c1_90 = arith.constant 1 : index
    %c0_91 = arith.constant 0 : index
    %c0_92 = arith.constant 0 : index
    %256 = vector.load %arg10[%c1_90, %c0_91, %c0_92] : memref<2x1x32xf32, #tpu.memory_space<vmem>>, vector<1x1x32xf32>
    %257 = vector.shape_cast %256 : vector<1x1x32xf32> to vector<1x32xf32>
    %c1_93 = arith.constant 1 : index
    %c0_94 = arith.constant 0 : index
    %c0_95 = arith.constant 0 : index
    %258 = vector.load %arg11[%c1_93, %c0_94, %c0_95] : memref<2x1x32xf32, #tpu.memory_space<vmem>>, vector<1x1x32xf32>
    %259 = vector.shape_cast %258 : vector<1x1x32xf32> to vector<1x32xf32>
    %cst_96 = arith.constant dense<0.000000e+00> : vector<8xf32>
    %260 = vector.multi_reduction <add>, %255, %cst_96 [1] : vector<8x32xf32> to vector<8xf32>
    %261 = vector.shape_cast %260 : vector<8xf32> to vector<8x1xf32>
    %cst_97 = arith.constant 3.200000e+01 : f32
    %262 = vector.broadcast %cst_97 : f32 to vector<8x1xf32>
    %263 = arith.divf %261, %262 : vector<8x1xf32>
    %264 = vector.broadcast %263 : vector<8x1xf32> to vector<8x32xf32>
    %265 = arith.subf %255, %264 : vector<8x32xf32>
    %266 = arith.mulf %265, %265 : vector<8x32xf32>
    %cst_98 = arith.constant dense<0.000000e+00> : vector<8xf32>
    %267 = vector.multi_reduction <add>, %266, %cst_98 [1] : vector<8x32xf32> to vector<8xf32>
    %268 = vector.shape_cast %267 : vector<8xf32> to vector<8x1xf32>
    %cst_99 = arith.constant 3.200000e+01 : f32
    %269 = vector.broadcast %cst_99 : f32 to vector<8x1xf32>
    %270 = arith.divf %268, %269 : vector<8x1xf32>
    %271 = vector.broadcast %263 : vector<8x1xf32> to vector<8x32xf32>
    %272 = arith.subf %255, %271 : vector<8x32xf32>
    %cst_100 = arith.constant 9.99999974E-6 : f32
    %273 = vector.broadcast %cst_100 : f32 to vector<8x1xf32>
    %274 = arith.addf %270, %273 : vector<8x1xf32>
    %275 = math.rsqrt %274 : vector<8x1xf32>
    %276 = vector.broadcast %275 : vector<8x1xf32> to vector<8x32xf32>
    %277 = arith.mulf %272, %276 : vector<8x32xf32>
    %278 = vector.broadcast %257 : vector<1x32xf32> to vector<8x32xf32>
    %279 = arith.mulf %277, %278 : vector<8x32xf32>
    %280 = vector.broadcast %259 : vector<1x32xf32> to vector<8x32xf32>
    %281 = arith.addf %279, %280 : vector<8x32xf32>
    %282 = arith.truncf %254 : vector<8x32xf32> to vector<8x32xbf16>
    %cst_101 = arith.constant dense<0.000000e+00> : vector<8x96xf32>
    %283 = tpu.matmul %282, %6, %cst_101 {dimension_numbers = #tpu.dot_dimension_numbers<[1], [0], [0], [1], [0, 0, 1, 1], [], []>} : vector<8x32xbf16>, vector<32x96xbf16>, vector<8x96xf32> -> vector<8x96xf32>
    %284 = arith.truncf %281 : vector<8x32xf32> to vector<8x32xbf16>
    %cst_102 = arith.constant dense<0.000000e+00> : vector<8x96xf32>
    %285 = tpu.matmul %284, %7, %cst_102 {dimension_numbers = #tpu.dot_dimension_numbers<[1], [0], [0], [1], [0, 0, 1, 1], [], []>} : vector<8x32xbf16>, vector<32x96xbf16>, vector<8x96xf32> -> vector<8x96xf32>
    %286 = arith.addf %283, %285 : vector<8x96xf32>
    %287 = vector.extract_strided_slice %286 {offsets = [0, 0], sizes = [8, 32], strides = [1, 1]} : vector<8x96xf32> to vector<8x32xf32>
    %288 = vector.extract_strided_slice %286 {offsets = [0, 32], sizes = [8, 32], strides = [1, 1]} : vector<8x96xf32> to vector<8x32xf32>
    %289 = vector.extract_strided_slice %286 {offsets = [0, 64], sizes = [8, 32], strides = [1, 1]} : vector<8x96xf32> to vector<8x32xf32>
    %290 = vector.extract_strided_slice %288 {offsets = [0, 0], sizes = [7, 32], strides = [1, 1]} : vector<8x32xf32> to vector<7x32xf32>
    %291 = tpu.concatenate %9, %290 in 0 : vector<1x32xf32>, vector<7x32xf32> -> vector<8x32xf32>
    %292 = vector.extract_strided_slice %289 {offsets = [1, 0], sizes = [7, 32], strides = [1, 1]} : vector<8x32xf32> to vector<7x32xf32>
    %293 = tpu.concatenate %292, %9 in 0 : vector<7x32xf32>, vector<1x32xf32> -> vector<8x32xf32>
    %294 = arith.addf %287, %291 : vector<8x32xf32>
    %295 = arith.addf %294, %293 : vector<8x32xf32>
    %c0_103 = arith.constant 0 : index
    %c0_104 = arith.constant 0 : index
    %296 = vector.load %arg14[%c0_103, %c0_104] : memref<1x32xf32, #tpu.memory_space<vmem>>, vector<1x32xf32>
    %297 = vector.broadcast %296 : vector<1x32xf32> to vector<8x32xf32>
    %298 = arith.addf %295, %297 : vector<8x32xf32>
    %cst_105 = arith.constant 0.000000e+00 : f32
    %299 = vector.broadcast %cst_105 : f32 to vector<8x32xf32>
    %300 = arith.maximumf %298, %299 : vector<8x32xf32>
    %301 = arith.truncf %300 : vector<8x32xf32> to vector<8x32xbf16>
    %cst_106 = arith.constant dense<0.000000e+00> : vector<8x32xf32>
    %302 = tpu.matmul %301, %8, %cst_106 {dimension_numbers = #tpu.dot_dimension_numbers<[1], [0], [0], [1], [0, 0, 1, 1], [], []>} : vector<8x32xbf16>, vector<32x32xbf16>, vector<8x32xf32> -> vector<8x32xf32>
    %c0_107 = arith.constant 0 : index
    %c0_108 = arith.constant 0 : index
    %303 = vector.load %arg16[%c0_107, %c0_108] : memref<1x32xf32, #tpu.memory_space<vmem>>, vector<1x32xf32>
    %304 = vector.broadcast %303 : vector<1x32xf32> to vector<8x32xf32>
    %305 = arith.addf %302, %304 : vector<8x32xf32>
    %306 = arith.addf %305, %254 : vector<8x32xf32>
    %c0_109 = arith.constant 0 : index
    %c0_110 = arith.constant 0 : index
    %c0_111 = arith.constant 0 : index
    %307 = vector.load %arg17[%c0_109, %c0_110, %c0_111] : memref<2x1x32xf32, #tpu.memory_space<vmem>>, vector<1x1x32xf32>
    %308 = vector.shape_cast %307 : vector<1x1x32xf32> to vector<1x32xf32>
    %c0_112 = arith.constant 0 : index
    %c0_113 = arith.constant 0 : index
    %c0_114 = arith.constant 0 : index
    %309 = vector.load %arg18[%c0_112, %c0_113, %c0_114] : memref<2x1x32xf32, #tpu.memory_space<vmem>>, vector<1x1x32xf32>
    %310 = vector.shape_cast %309 : vector<1x1x32xf32> to vector<1x32xf32>
    %cst_115 = arith.constant dense<0.000000e+00> : vector<8xf32>
    %311 = vector.multi_reduction <add>, %306, %cst_115 [1] : vector<8x32xf32> to vector<8xf32>
    %312 = vector.shape_cast %311 : vector<8xf32> to vector<8x1xf32>
    %cst_116 = arith.constant 3.200000e+01 : f32
    %313 = vector.broadcast %cst_116 : f32 to vector<8x1xf32>
    %314 = arith.divf %312, %313 : vector<8x1xf32>
    %315 = vector.broadcast %314 : vector<8x1xf32> to vector<8x32xf32>
    %316 = arith.subf %306, %315 : vector<8x32xf32>
    %317 = arith.mulf %316, %316 : vector<8x32xf32>
    %cst_117 = arith.constant dense<0.000000e+00> : vector<8xf32>
    %318 = vector.multi_reduction <add>, %317, %cst_117 [1] : vector<8x32xf32> to vector<8xf32>
    %319 = vector.shape_cast %318 : vector<8xf32> to vector<8x1xf32>
    %cst_118 = arith.constant 3.200000e+01 : f32
    %320 = vector.broadcast %cst_118 : f32 to vector<8x1xf32>
    %321 = arith.divf %319, %320 : vector<8x1xf32>
    %322 = vector.broadcast %314 : vector<8x1xf32> to vector<8x32xf32>
    %323 = arith.subf %306, %322 : vector<8x32xf32>
    %cst_119 = arith.constant 9.99999974E-6 : f32
    %324 = vector.broadcast %cst_119 : f32 to vector<8x1xf32>
    %325 = arith.addf %321, %324 : vector<8x1xf32>
    %326 = math.rsqrt %325 : vector<8x1xf32>
    %327 = vector.broadcast %326 : vector<8x1xf32> to vector<8x32xf32>
    %328 = arith.mulf %323, %327 : vector<8x32xf32>
    %329 = vector.broadcast %308 : vector<1x32xf32> to vector<8x32xf32>
    %330 = arith.mulf %328, %329 : vector<8x32xf32>
    %331 = vector.broadcast %310 : vector<1x32xf32> to vector<8x32xf32>
    %332 = arith.addf %330, %331 : vector<8x32xf32>
    %c0_120 = arith.constant 0 : index
    %c0_121 = arith.constant 0 : index
    %c0_122 = arith.constant 0 : index
    %333 = vector.load %arg19[%c0_120, %c0_121, %c0_122] : memref<1x8x32xf32, #tpu.memory_space<vmem>>, vector<1x8x32xf32>
    %334 = vector.shape_cast %333 : vector<1x8x32xf32> to vector<8x32xf32>
    %335 = vector.shape_cast %332 : vector<8x32xf32> to vector<1x8x32xf32>
    tpu.vector_store %arg19[%c0_120, %c0_121, %c0_122], %335 {strides = array<i32>} : memref<1x8x32xf32, #tpu.memory_space<vmem>>, vector<1x8x32xf32>,
    %336 = arith.addf %305, %281 : vector<8x32xf32>
    %c1_123 = arith.constant 1 : index
    %c0_124 = arith.constant 0 : index
    %c0_125 = arith.constant 0 : index
    %337 = vector.load %arg17[%c1_123, %c0_124, %c0_125] : memref<2x1x32xf32, #tpu.memory_space<vmem>>, vector<1x1x32xf32>
    %338 = vector.shape_cast %337 : vector<1x1x32xf32> to vector<1x32xf32>
    %c1_126 = arith.constant 1 : index
    %c0_127 = arith.constant 0 : index
    %c0_128 = arith.constant 0 : index
    %339 = vector.load %arg18[%c1_126, %c0_127, %c0_128] : memref<2x1x32xf32, #tpu.memory_space<vmem>>, vector<1x1x32xf32>
    %340 = vector.shape_cast %339 : vector<1x1x32xf32> to vector<1x32xf32>
    %cst_129 = arith.constant dense<0.000000e+00> : vector<8xf32>
    %341 = vector.multi_reduction <add>, %336, %cst_129 [1] : vector<8x32xf32> to vector<8xf32>
    %342 = vector.shape_cast %341 : vector<8xf32> to vector<8x1xf32>
    %cst_130 = arith.constant 3.200000e+01 : f32
    %343 = vector.broadcast %cst_130 : f32 to vector<8x1xf32>
    %344 = arith.divf %342, %343 : vector<8x1xf32>
    %345 = vector.broadcast %344 : vector<8x1xf32> to vector<8x32xf32>
    %346 = arith.subf %336, %345 : vector<8x32xf32>
    %347 = arith.mulf %346, %346 : vector<8x32xf32>
    %cst_131 = arith.constant dense<0.000000e+00> : vector<8xf32>
    %348 = vector.multi_reduction <add>, %347, %cst_131 [1] : vector<8x32xf32> to vector<8xf32>
    %349 = vector.shape_cast %348 : vector<8xf32> to vector<8x1xf32>
    %cst_132 = arith.constant 3.200000e+01 : f32
    %350 = vector.broadcast %cst_132 : f32 to vector<8x1xf32>
    %351 = arith.divf %349, %350 : vector<8x1xf32>
    %352 = vector.broadcast %344 : vector<8x1xf32> to vector<8x32xf32>
    %353 = arith.subf %336, %352 : vector<8x32xf32>
    %cst_133 = arith.constant 9.99999974E-6 : f32
    %354 = vector.broadcast %cst_133 : f32 to vector<8x1xf32>
    %355 = arith.addf %351, %354 : vector<8x1xf32>
    %356 = math.rsqrt %355 : vector<8x1xf32>
    %357 = vector.broadcast %356 : vector<8x1xf32> to vector<8x32xf32>
    %358 = arith.mulf %353, %357 : vector<8x32xf32>
    %359 = vector.broadcast %338 : vector<1x32xf32> to vector<8x32xf32>
    %360 = arith.mulf %358, %359 : vector<8x32xf32>
    %361 = vector.broadcast %340 : vector<1x32xf32> to vector<8x32xf32>
    %362 = arith.addf %360, %361 : vector<8x32xf32>
    %c0_134 = arith.constant 0 : index
    %c0_135 = arith.constant 0 : index
    %c0_136 = arith.constant 0 : index
    %363 = vector.load %arg20[%c0_134, %c0_135, %c0_136] : memref<1x8x32xf32, #tpu.memory_space<vmem>>, vector<1x8x32xf32>
    %364 = vector.shape_cast %363 : vector<1x8x32xf32> to vector<8x32xf32>
    %365 = vector.shape_cast %362 : vector<8x32xf32> to vector<1x8x32xf32>
    tpu.vector_store %arg20[%c0_134, %c0_135, %c0_136], %365 {strides = array<i32>} : memref<1x8x32xf32, #tpu.memory_space<vmem>>, vector<1x8x32xf32>,
    return
  }
  func.func @transform_0(%arg0: i32) -> (i32, i32, i32) {
    %c0_i32 = arith.constant 0 : i32
    %c0_i32_0 = arith.constant 0 : i32
    %c0_i32_1 = arith.constant 0 : i32
    return %arg0, %c0_i32, %c0_i32_0 : i32, i32, i32
  }
  func.func @transform_1(%arg0: i32) -> (i32, i32, i32) {
    %c0_i32 = arith.constant 0 : i32
    %c0_i32_0 = arith.constant 0 : i32
    %c0_i32_1 = arith.constant 0 : i32
    return %arg0, %c0_i32, %c0_i32_0 : i32, i32, i32
  }
  func.func @transform_2(%arg0: i32) -> (i32, i32, i32) {
    %c0_i32 = arith.constant 0 : i32
    %c0_i32_0 = arith.constant 0 : i32
    %c0_i32_1 = arith.constant 0 : i32
    return %arg0, %c0_i32, %c0_i32_0 : i32, i32, i32
  }
  func.func @transform_3(%arg0: i32) -> (i32, i32) {
    %c0_i32 = arith.constant 0 : i32
    %c0_i32_0 = arith.constant 0 : i32
    %c0_i32_1 = arith.constant 0 : i32
    return %c0_i32, %c0_i32_0 : i32, i32
  }
  func.func @transform_4(%arg0: i32) -> (i32, i32) {
    %c0_i32 = arith.constant 0 : i32
    %c0_i32_0 = arith.constant 0 : i32
    %c0_i32_1 = arith.constant 0 : i32
    return %c0_i32, %c0_i32_0 : i32, i32
  }
  func.func @transform_5(%arg0: i32) -> (i32, i32) {
    %c0_i32 = arith.constant 0 : i32
    %c0_i32_0 = arith.constant 0 : i32
    %c0_i32_1 = arith.constant 0 : i32
    return %c0_i32, %c0_i32_0 : i32, i32
  }
  func.func @transform_6(%arg0: i32) -> (i32, i32) {
    %c0_i32 = arith.constant 0 : i32
    %c0_i32_0 = arith.constant 0 : i32
    %c0_i32_1 = arith.constant 0 : i32
    return %c0_i32, %c0_i32_0 : i32, i32
  }
  func.func @transform_7(%arg0: i32) -> (i32, i32, i32) {
    %c0_i32 = arith.constant 0 : i32
    %c0_i32_0 = arith.constant 0 : i32
    %c0_i32_1 = arith.constant 0 : i32
    %c0_i32_2 = arith.constant 0 : i32
    return %c0_i32, %c0_i32_0, %c0_i32_1 : i32, i32, i32
  }
  func.func @transform_8(%arg0: i32) -> (i32, i32, i32) {
    %c0_i32 = arith.constant 0 : i32
    %c0_i32_0 = arith.constant 0 : i32
    %c0_i32_1 = arith.constant 0 : i32
    %c0_i32_2 = arith.constant 0 : i32
    return %c0_i32, %c0_i32_0, %c0_i32_1 : i32, i32, i32
  }
  func.func @transform_9(%arg0: i32) -> (i32, i32, i32) {
    %c0_i32 = arith.constant 0 : i32
    %c0_i32_0 = arith.constant 0 : i32
    %c0_i32_1 = arith.constant 0 : i32
    %c0_i32_2 = arith.constant 0 : i32
    return %c0_i32, %c0_i32_0, %c0_i32_1 : i32, i32, i32
  }
  func.func @transform_10(%arg0: i32) -> (i32, i32, i32) {
    %c0_i32 = arith.constant 0 : i32
    %c0_i32_0 = arith.constant 0 : i32
    %c0_i32_1 = arith.constant 0 : i32
    %c0_i32_2 = arith.constant 0 : i32
    return %c0_i32, %c0_i32_0, %c0_i32_1 : i32, i32, i32
  }
  func.func @transform_11(%arg0: i32) -> (i32, i32) {
    %c0_i32 = arith.constant 0 : i32
    %c0_i32_0 = arith.constant 0 : i32
    %c0_i32_1 = arith.constant 0 : i32
    return %c0_i32, %c0_i32_0 : i32, i32
  }
  func.func @transform_12(%arg0: i32) -> (i32, i32) {
    %c0_i32 = arith.constant 0 : i32
    %c0_i32_0 = arith.constant 0 : i32
    %c0_i32_1 = arith.constant 0 : i32
    return %c0_i32, %c0_i32_0 : i32, i32
  }
  func.func @transform_13(%arg0: i32) -> (i32, i32) {
    %c0_i32 = arith.constant 0 : i32
    %c0_i32_0 = arith.constant 0 : i32
    %c0_i32_1 = arith.constant 0 : i32
    return %c0_i32, %c0_i32_0 : i32, i32
  }
  func.func @transform_14(%arg0: i32) -> (i32, i32) {
    %c0_i32 = arith.constant 0 : i32
    %c0_i32_0 = arith.constant 0 : i32
    %c0_i32_1 = arith.constant 0 : i32
    return %c0_i32, %c0_i32_0 : i32, i32
  }
  func.func @transform_15(%arg0: i32) -> (i32, i32) {
    %c0_i32 = arith.constant 0 : i32
    %c0_i32_0 = arith.constant 0 : i32
    %c0_i32_1 = arith.constant 0 : i32
    return %c0_i32, %c0_i32_0 : i32, i32
  }
  func.func @transform_16(%arg0: i32) -> (i32, i32, i32) {
    %c0_i32 = arith.constant 0 : i32
    %c0_i32_0 = arith.constant 0 : i32
    %c0_i32_1 = arith.constant 0 : i32
    %c0_i32_2 = arith.constant 0 : i32
    return %c0_i32, %c0_i32_0, %c0_i32_1 : i32, i32, i32
  }
  func.func @transform_17(%arg0: i32) -> (i32, i32, i32) {
    %c0_i32 = arith.constant 0 : i32
    %c0_i32_0 = arith.constant 0 : i32
    %c0_i32_1 = arith.constant 0 : i32
    %c0_i32_2 = arith.constant 0 : i32
    return %c0_i32, %c0_i32_0, %c0_i32_1 : i32, i32, i32
  }
  func.func @transform_18(%arg0: i32) -> (i32, i32, i32) {
    %c0_i32 = arith.constant 0 : i32
    %c0_i32_0 = arith.constant 0 : i32
    %c0_i32_1 = arith.constant 0 : i32
    return %arg0, %c0_i32, %c0_i32_0 : i32, i32, i32
  }
  func.func @transform_19(%arg0: i32) -> (i32, i32, i32) {
    %c0_i32 = arith.constant 0 : i32
    %c0_i32_0 = arith.constant 0 : i32
    %c0_i32_1 = arith.constant 0 : i32
    return %arg0, %c0_i32, %c0_i32_0 : i32, i32, i32
  }
}

</mosaic_0001>

<llo_original>
// kernel: tpu_custom_call.1
$region0: #{tpu_custom_call.1}
  #allocation0 [shape = 'u32[]', space=smem, size = 0x4, offset = 0x4, fixed_abs, tag = 'smem constant byte address 0x4 - core index']
  #allocation1 [shape = 'u32[72,128]{1,0:T(1,128)}', space=vmem, size = 0x9000, scoped, tag = 'internal scratch']
  %s0 = inlined_call_operand.hbm [shape: f32[2,1,8], index: 0, kind: input, shape index: {}]
  %s1 = inlined_call_operand.hbm [shape: f32[2,8,32], index: 1, kind: input, shape index: {}]
  %s2 = inlined_call_operand.hbm [shape: f32[2,8,32], index: 2, kind: input, shape index: {}]
  %s3 = inlined_call_operand.hbm [shape: bf16[32,96], index: 3, kind: input, shape index: {}]
  %s4 = inlined_call_operand.hbm [shape: f32[1,96], index: 4, kind: input, shape index: {}]
  %s5 = inlined_call_operand.hbm [shape: bf16[32,96], index: 5, kind: input, shape index: {}]
  %s6 = inlined_call_operand.hbm [shape: f32[1,96], index: 6, kind: input, shape index: {}]
  %s7 = inlined_call_operand.hbm [shape: bf16[2,32,32], index: 7, kind: input, shape index: {}]
  %s8 = inlined_call_operand.vmem [shape: f32[2,1,32], index: 8, kind: input, shape index: {}]
  %s9 = inlined_call_operand.vmem [shape: f32[2,1,32], index: 9, kind: input, shape index: {}]
  %s10 = inlined_call_operand.vmem [shape: f32[2,1,32], index: 10, kind: input, shape index: {}]
  %s11 = inlined_call_operand.hbm [shape: bf16[32,96], index: 11, kind: input, shape index: {}]
  %s12 = inlined_call_operand.hbm [shape: bf16[32,96], index: 12, kind: input, shape index: {}]
  %s13 = inlined_call_operand.vmem [shape: f32[1,32], index: 13, kind: input, shape index: {}]
  %s14 = inlined_call_operand.hbm [shape: bf16[32,32], index: 14, kind: input, shape index: {}]
  %s15 = inlined_call_operand.vmem [shape: f32[1,32], index: 15, kind: input, shape index: {}]
  %s16 = inlined_call_operand.vmem [shape: f32[2,1,32], index: 16, kind: input, shape index: {}]
  %s17 = inlined_call_operand.vmem [shape: f32[2,1,32], index: 17, kind: input, shape index: {}]
  %s18 = inlined_call_operand.hbm [shape: f32[2,8,32], index: 18, kind: output, shape index: {0}]
  %s19 = inlined_call_operand.hbm [shape: f32[2,8,32], index: 19, kind: output, shape index: {1}]
  %20 = xla_tuple %s18, %s19
  %s21 = sld [smem:[#allocation0]]
  $region157: #{tpu_custom_call.1} parent=0
    _
  %s23 = ssub.s32 1, %s21
  %s24 = scalar_select 0, %s23, %s21
  $region1: #{tpu_custom_call.1} parent=0
    #allocation2 [shape = 'u8[1024]{0}', space=vmem, size = 0x400, scoped, tag = 'input window, operand 0']
    #allocation3 [shape = 's32[2]{0}', space=sflag, size = 0x8, scoped, tag = 'scoped memory for tpu_custom_call.1']
    #allocation4 [shape = 's32[2]{0}', space=sflag, size = 0x8, scoped, tag = 'scoped memory for tpu_custom_call.1']
    #allocation5 [shape = 'u8[8192]{0}', space=vmem, size = 0x2000, scoped, tag = 'input window, operand 1']
    #allocation6 [shape = 's32[2]{0}', space=sflag, size = 0x8, scoped, tag = 'scoped memory for tpu_custom_call.1']
    #allocation7 [shape = 'u8[8192]{0}', space=vmem, size = 0x2000, scoped, tag = 'input window, operand 2']
    #allocation8 [shape = 'u8[8192]{0}', space=vmem, size = 0x2000, scoped, tag = 'input window, operand 3, single buffered']
    #allocation9 [shape = 's32[1]{0}', space=sflag, size = 0x4, scoped, tag = 'scoped memory for tpu_custom_call.1']
    #allocation10 [shape = 'u8[512]{0}', space=vmem, size = 0x400, scoped, tag = 'input window, operand 4, single buffered']
    #allocation11 [shape = 'u8[8192]{0}', space=vmem, size = 0x2000, scoped, tag = 'input window, operand 5, single buffered']
    #allocation12 [shape = 's32[1]{0}', space=sflag, size = 0x4, scoped, tag = 'scoped memory for tpu_custom_call.1']
    #allocation13 [shape = 'u8[512]{0}', space=vmem, size = 0x400, scoped, tag = 'input window, operand 6, single buffered']
    #allocation14 [shape = 'u8[16384]{0}', space=vmem, size = 0x4000, scoped, tag = 'input window, operand 7, single buffered']
    #allocation15 [shape = 's32[1]{0}', space=sflag, size = 0x4, scoped, tag = 'scoped memory for tpu_custom_call.1']
    #allocation16 [shape = 'u8[8192]{0}', space=vmem, size = 0x2000, scoped, tag = 'input window, operand 11, single buffered']
    #allocation17 [shape = 'u8[8192]{0}', space=vmem, size = 0x2000, scoped, tag = 'input window, operand 12, single buffered']
    #allocation18 [shape = 's32[1]{0}', space=sflag, size = 0x4, scoped, tag = 'scoped memory for tpu_custom_call.1']
    #allocation19 [shape = 'u8[8192]{0}', space=vmem, size = 0x2000, scoped, tag = 'input window, operand 14, single buffered']
    #allocation20 [shape = 'u8[8192]{0}', space=vmem, size = 0x2000, scoped, tag = 'output window, operand 0']
    #allocation21 [shape = 'u8[8192]{0}', space=vmem, size = 0x2000, scoped, tag = 'output window, operand 1']
    #allocation22 [shape = 's32[2]{0}', space=sflag, size = 0x8, scoped, tag = 'scoped memory for tpu_custom_call.1']
    %25 = vsyncpa [#allocation3], 0
    %s26 = scalar_lea.sflag [#allocation3], 1
    %27 = vsyncpa %s26, 0
    %28 = vsyncpa [#allocation6], 0
    %s29 = scalar_lea.sflag [#allocation6], 1
    %30 = vsyncpa %s29, 0
    %31 = vsyncpa [#allocation9], 0
    %32 = vsyncpa [#allocation12], 0
    %33 = vsyncpa [#allocation15], 0
    %34 = vsyncpa [#allocation18], 0
    %35 = vsyncpa [#allocation4], 0
    %s36 = scalar_lea.sflag [#allocation4], 1
    %37 = vsyncpa %s36, 0
    %38 = vsyncpa [#allocation22], 0
    %s39 = scalar_lea.sflag [#allocation22], 1
    %40 = vsyncpa %s39, 0
    loop: start=0, step=1, limit=4
    $region2: #{tpu_custom_call.1} parent=1 // loop_pre_header
      _
    $region3: #{tpu_custom_call.1} parent=1 // loop_header
      %s42 = sphi 0, %s46
      %p43 = scmp.ge.s32.totalorder %s42, 4
      %s52 = sphi 0, %s54
      %s55 = sphi 0, %s52
      %s56 = sphi 0, %s55
      %s72 = sphi 0, %s56
      %s78 = sphi 0, %s80
      %s81 = sphi 0, %s78
      %s82 = sphi 0, %s81
      %s98 = sphi 0, %s82
      %s104 = sphi 0, %s106
      %s107 = sphi 0, %s104
      %s108 = sphi 0, %s107
      %s124 = sphi 0, %s108
      %s128 = sphi 0, %s128
      %s130 = sphi 0, %s128
      %s131 = sphi 0, %s130
      %s145 = sphi 0, %s131
      %s149 = sphi 0, %s149
      %s151 = sphi 0, %s149
      %s152 = sphi 0, %s151
      %s166 = sphi 0, %s152
      %s170 = sphi 0, %s170
      %s172 = sphi 0, %s170
      %s173 = sphi 0, %s172
      %s187 = sphi 0, %s173
      %s191 = sphi 0, %s191
      %s193 = sphi 0, %s191
      %s194 = sphi 0, %s193
      %s208 = sphi 0, %s194
      %s212 = sphi 0, %s212
      %s214 = sphi 0, %s212
      %s215 = sphi 0, %s214
      %s229 = sphi 0, %s215
      %s233 = sphi 0, %s233
      %s235 = sphi 0, %s233
      %s236 = sphi 0, %s235
      %s250 = sphi 0, %s236
      %s254 = sphi 0, %s254
      %s256 = sphi 0, %s254
      %s257 = sphi 0, %s256
      %s271 = sphi 0, %s257
      %s275 = sphi 0, %s275
      %s277 = sphi 0, %s275
      %s278 = sphi 0, %s277
      %s292 = sphi 0, %s278
      %s296 = sphi 0, %s296
      %s298 = sphi 0, %s296
      %s299 = sphi 0, %s298
      %s313 = sphi 0, %s299
      %s317 = sphi 0, %s317
      %s319 = sphi 0, %s317
      %s320 = sphi 0, %s319
      %s334 = sphi 0, %s320
      %s338 = sphi 0, %s338
      %s340 = sphi 0, %s338
      %s341 = sphi 0, %s340
      %s355 = sphi 0, %s341
      %s359 = sphi 0, %s359
      %s361 = sphi 0, %s359
      %s362 = sphi 0, %s361
      %s376 = sphi 0, %s362
      %s380 = sphi 0, %s380
      %s382 = sphi 0, %s380
      %s383 = sphi 0, %s382
      %s397 = sphi 0, %s383
      %s401 = sphi 0, %s401
      %s403 = sphi 0, %s401
      %s404 = sphi 0, %s403
      %s418 = sphi 0, %s404
      %s422 = sphi 0, %s422
      %s424 = sphi 0, %s422
      %s425 = sphi 0, %s424
      %s439 = sphi 0, %s425
      %s445 = sphi 0, %s447
      %s448 = sphi 0, %s445
      %s449 = sphi 0, %s448
      %s465 = sphi 0, %s449
      %s471 = sphi 0, %s473
      %s474 = sphi 0, %s471
      %s475 = sphi 0, %s474
      %s491 = sphi 0, %s475
    $region4: #{tpu_custom_call.1} parent=1 // loop_header_branch
      %45 = sbr.rel (%p43) target = $region8
    $region5: #{tpu_custom_call.1} parent=1 // loop_body
      %s47 = ssub.s32 %s42, 1
      %s48 = ssub.s32 %s42, 2
      %s49 = sadd.s32 %s42, 1
      %s50 = ssub.s32 %s42, %s49
      %p51 = scmp.eq.s32.totalorder %s50, 0
      %s53 = sadd.s32 %s52, 1
      %s54 = scalar_select %p51, %s52, %s53
      %p57 = pneg %p51
      %p58 = scmp.eq.s32.totalorder %s42, 1
      %p59 = por %p57, %p58
      %p60 = scmp.ne.s32.totalorder %s52, %s55
      %p61 = scmp.eq.s32.totalorder %s42, 0
      %p62 = por %p60, %p61
      %p63 = scmp.ne.s32.totalorder %s52, %s55
      %p64 = scmp.eq.s32.totalorder %s47, 1
      %p65 = por %p63, %p64
      %p66 = scmp.ne.s32.totalorder %s55, %s56
      %p67 = scmp.eq.s32.totalorder %s47, 0
      %p68 = por %p66, %p67
      %p69 = scmp.ne.s32.totalorder %s55, %s56
      %p70 = scmp.eq.s32.totalorder %s48, 1
      %p71 = por %p69, %p70
      %p73 = scmp.ne.s32.totalorder %s56, %s72
      %p74 = scmp.eq.s32.totalorder %s48, 0
      %p75 = por %p73, %p74
      %s76 = ssub.s32 %s42, %s49
      %p77 = scmp.eq.s32.totalorder %s76, 0
      %s79 = sadd.s32 %s78, 1
      %s80 = scalar_select %p77, %s78, %s79
      %p83 = pneg %p77
      %p84 = scmp.eq.s32.totalorder %s42, 1
      %p85 = por %p83, %p84
      %p86 = scmp.ne.s32.totalorder %s78, %s81
      %p87 = scmp.eq.s32.totalorder %s42, 0
      %p88 = por %p86, %p87
      %p89 = scmp.ne.s32.totalorder %s78, %s81
      %p90 = scmp.eq.s32.totalorder %s47, 1
      %p91 = por %p89, %p90
      %p92 = scmp.ne.s32.totalorder %s81, %s82
      %p93 = scmp.eq.s32.totalorder %s47, 0
      %p94 = por %p92, %p93
      %p95 = scmp.ne.s32.totalorder %s81, %s82
      %p96 = scmp.eq.s32.totalorder %s48, 1
      %p97 = por %p95, %p96
      %p99 = scmp.ne.s32.totalorder %s82, %s98
      %p100 = scmp.eq.s32.totalorder %s48, 0
      %p101 = por %p99, %p100
      %s102 = ssub.s32 %s42, %s49
      %p103 = scmp.eq.s32.totalorder %s102, 0
      %s105 = sadd.s32 %s104, 1
      %s106 = scalar_select %p103, %s104, %s105
      %p109 = pneg %p103
      %p110 = scmp.eq.s32.totalorder %s42, 1
      %p111 = por %p109, %p110
      %p112 = scmp.ne.s32.totalorder %s104, %s107
      %p113 = scmp.eq.s32.totalorder %s42, 0
      %p114 = por %p112, %p113
      %p115 = scmp.ne.s32.totalorder %s104, %s107
      %p116 = scmp.eq.s32.totalorder %s47, 1
      %p117 = por %p115, %p116
      %p118 = scmp.ne.s32.totalorder %s107, %s108
      %p119 = scmp.eq.s32.totalorder %s47, 0
      %p120 = por %p118, %p119
      %p121 = scmp.ne.s32.totalorder %s107, %s108
      %p122 = scmp.eq.s32.totalorder %s48, 1
      %p123 = por %p121, %p122
      %p125 = scmp.ne.s32.totalorder %s108, %s124
      %p126 = scmp.eq.s32.totalorder %s48, 0
      %p127 = por %p125, %p126
      %s129 = sadd.s32 %s128, 1
      %p132 = scmp.eq.s32.totalorder %s42, 1
      %p133 = scmp.ne.s32.totalorder %s128, %s130
      %p134 = scmp.eq.s32.totalorder %s42, 0
      %p135 = por %p133, %p134
      %p136 = scmp.ne.s32.totalorder %s128, %s130
      %p137 = scmp.eq.s32.totalorder %s47, 1
      %p138 = por %p136, %p137
      %p139 = scmp.ne.s32.totalorder %s130, %s131
      %p140 = scmp.eq.s32.totalorder %s47, 0
      %p141 = por %p139, %p140
      %p142 = scmp.ne.s32.totalorder %s130, %s131
      %p143 = scmp.eq.s32.totalorder %s48, 1
      %p144 = por %p142, %p143
      %p146 = scmp.ne.s32.totalorder %s131, %s145
      %p147 = scmp.eq.s32.totalorder %s48, 0
      %p148 = por %p146, %p147
      %s150 = sadd.s32 %s149, 1
      %p153 = scmp.eq.s32.totalorder %s42, 1
      %p154 = scmp.ne.s32.totalorder %s149, %s151
      %p155 = scmp.eq.s32.totalorder %s42, 0
      %p156 = por %p154, %p155
      %p157 = scmp.ne.s32.totalorder %s149, %s151
      %p158 = scmp.eq.s32.totalorder %s47, 1
      %p159 = por %p157, %p158
      %p160 = scmp.ne.s32.totalorder %s151, %s152
      %p161 = scmp.eq.s32.totalorder %s47, 0
      %p162 = por %p160, %p161
      %p163 = scmp.ne.s32.totalorder %s151, %s152
      %p164 = scmp.eq.s32.totalorder %s48, 1
      %p165 = por %p163, %p164
      %p167 = scmp.ne.s32.totalorder %s152, %s166
      %p168 = scmp.eq.s32.totalorder %s48, 0
      %p169 = por %p167, %p168
      %s171 = sadd.s32 %s170, 1
      %p174 = scmp.eq.s32.totalorder %s42, 1
      %p175 = scmp.ne.s32.totalorder %s170, %s172
      %p176 = scmp.eq.s32.totalorder %s42, 0
      %p177 = por %p175, %p176
      %p178 = scmp.ne.s32.totalorder %s170, %s172
      %p179 = scmp.eq.s32.totalorder %s47, 1
      %p180 = por %p178, %p179
      %p181 = scmp.ne.s32.totalorder %s172, %s173
      %p182 = scmp.eq.s32.totalorder %s47, 0
      %p183 = por %p181, %p182
      %p184 = scmp.ne.s32.totalorder %s172, %s173
      %p185 = scmp.eq.s32.totalorder %s48, 1
      %p186 = por %p184, %p185
      %p188 = scmp.ne.s32.totalorder %s173, %s187
      %p189 = scmp.eq.s32.totalorder %s48, 0
      %p190 = por %p188, %p189
      %s192 = sadd.s32 %s191, 1
      %p195 = scmp.eq.s32.totalorder %s42, 1
      %p196 = scmp.ne.s32.totalorder %s191, %s193
      %p197 = scmp.eq.s32.totalorder %s42, 0
      %p198 = por %p196, %p197
      %p199 = scmp.ne.s32.totalorder %s191, %s193
      %p200 = scmp.eq.s32.totalorder %s47, 1
      %p201 = por %p199, %p200
      %p202 = scmp.ne.s32.totalorder %s193, %s194
      %p203 = scmp.eq.s32.totalorder %s47, 0
      %p204 = por %p202, %p203
      %p205 = scmp.ne.s32.totalorder %s193, %s194
      %p206 = scmp.eq.s32.totalorder %s48, 1
      %p207 = por %p205, %p206
      %p209 = scmp.ne.s32.totalorder %s194, %s208
      %p210 = scmp.eq.s32.totalorder %s48, 0
      %p211 = por %p209, %p210
      %s213 = sadd.s32 %s212, 1
      %p216 = scmp.eq.s32.totalorder %s42, 1
      %p217 = scmp.ne.s32.totalorder %s212, %s214
      %p218 = scmp.eq.s32.totalorder %s42, 0
      %p219 = por %p217, %p218
      %p220 = scmp.ne.s32.totalorder %s212, %s214
      %p221 = scmp.eq.s32.totalorder %s47, 1
      %p222 = por %p220, %p221
      %p223 = scmp.ne.s32.totalorder %s214, %s215
      %p224 = scmp.eq.s32.totalorder %s47, 0
      %p225 = por %p223, %p224
      %p226 = scmp.ne.s32.totalorder %s214, %s215
      %p227 = scmp.eq.s32.totalorder %s48, 1
      %p228 = por %p226, %p227
      %p230 = scmp.ne.s32.totalorder %s215, %s229
      %p231 = scmp.eq.s32.totalorder %s48, 0
      %p232 = por %p230, %p231
      %s234 = sadd.s32 %s233, 1
      %p237 = scmp.eq.s32.totalorder %s42, 1
      %p238 = scmp.ne.s32.totalorder %s233, %s235
      %p239 = scmp.eq.s32.totalorder %s42, 0
      %p240 = por %p238, %p239
      %p241 = scmp.ne.s32.totalorder %s233, %s235
      %p242 = scmp.eq.s32.totalorder %s47, 1
      %p243 = por %p241, %p242
      %p244 = scmp.ne.s32.totalorder %s235, %s236
      %p245 = scmp.eq.s32.totalorder %s47, 0
      %p246 = por %p244, %p245
      %p247 = scmp.ne.s32.totalorder %s235, %s236
      %p248 = scmp.eq.s32.totalorder %s48, 1
      %p249 = por %p247, %p248
      %p251 = scmp.ne.s32.totalorder %s236, %s250
      %p252 = scmp.eq.s32.totalorder %s48, 0
      %p253 = por %p251, %p252
      %s255 = sadd.s32 %s254, 1
      %p258 = scmp.eq.s32.totalorder %s42, 1
      %p259 = scmp.ne.s32.totalorder %s254, %s256
      %p260 = scmp.eq.s32.totalorder %s42, 0
      %p261 = por %p259, %p260
      %p262 = scmp.ne.s32.totalorder %s254, %s256
      %p263 = scmp.eq.s32.totalorder %s47, 1
      %p264 = por %p262, %p263
      %p265 = scmp.ne.s32.totalorder %s256, %s257
      %p266 = scmp.eq.s32.totalorder %s47, 0
      %p267 = por %p265, %p266
      %p268 = scmp.ne.s32.totalorder %s256, %s257
      %p269 = scmp.eq.s32.totalorder %s48, 1
      %p270 = por %p268, %p269
      %p272 = scmp.ne.s32.totalorder %s257, %s271
      %p273 = scmp.eq.s32.totalorder %s48, 0
      %p274 = por %p272, %p273
      %s276 = sadd.s32 %s275, 1
      %p279 = scmp.eq.s32.totalorder %s42, 1
      %p280 = scmp.ne.s32.totalorder %s275, %s277
      %p281 = scmp.eq.s32.totalorder %s42, 0
      %p282 = por %p280, %p281
      %p283 = scmp.ne.s32.totalorder %s275, %s277
      %p284 = scmp.eq.s32.totalorder %s47, 1
      %p285 = por %p283, %p284
      %p286 = scmp.ne.s32.totalorder %s277, %s278
      %p287 = scmp.eq.s32.totalorder %s47, 0
      %p288 = por %p286, %p287
      %p289 = scmp.ne.s32.totalorder %s277, %s278
      %p290 = scmp.eq.s32.totalorder %s48, 1
      %p291 = por %p289, %p290
      %p293 = scmp.ne.s32.totalorder %s278, %s292
      %p294 = scmp.eq.s32.totalorder %s48, 0
      %p295 = por %p293, %p294
      %s297 = sadd.s32 %s296, 1
      %p300 = scmp.eq.s32.totalorder %s42, 1
      %p301 = scmp.ne.s32.totalorder %s296, %s298
      %p302 = scmp.eq.s32.totalorder %s42, 0
      %p303 = por %p301, %p302
      %p304 = scmp.ne.s32.totalorder %s296, %s298
      %p305 = scmp.eq.s32.totalorder %s47, 1
      %p306 = por %p304, %p305
      %p307 = scmp.ne.s32.totalorder %s298, %s299
      %p308 = scmp.eq.s32.totalorder %s47, 0
      %p309 = por %p307, %p308
      %p310 = scmp.ne.s32.totalorder %s298, %s299
      %p311 = scmp.eq.s32.totalorder %s48, 1
      %p312 = por %p310, %p311
      %p314 = scmp.ne.s32.totalorder %s299, %s313
      %p315 = scmp.eq.s32.totalorder %s48, 0
      %p316 = por %p314, %p315
      %s318 = sadd.s32 %s317, 1
      %p321 = scmp.eq.s32.totalorder %s42, 1
      %p322 = scmp.ne.s32.totalorder %s317, %s319
      %p323 = scmp.eq.s32.totalorder %s42, 0
      %p324 = por %p322, %p323
      %p325 = scmp.ne.s32.totalorder %s317, %s319
      %p326 = scmp.eq.s32.totalorder %s47, 1
      %p327 = por %p325, %p326
      %p328 = scmp.ne.s32.totalorder %s319, %s320
      %p329 = scmp.eq.s32.totalorder %s47, 0
      %p330 = por %p328, %p329
      %p331 = scmp.ne.s32.totalorder %s319, %s320
      %p332 = scmp.eq.s32.totalorder %s48, 1
      %p333 = por %p331, %p332
      %p335 = scmp.ne.s32.totalorder %s320, %s334
      %p336 = scmp.eq.s32.totalorder %s48, 0
      %p337 = por %p335, %p336
      %s339 = sadd.s32 %s338, 1
      %p342 = scmp.eq.s32.totalorder %s42, 1
      %p343 = scmp.ne.s32.totalorder %s338, %s340
      %p344 = scmp.eq.s32.totalorder %s42, 0
      %p345 = por %p343, %p344
      %p346 = scmp.ne.s32.totalorder %s338, %s340
      %p347 = scmp.eq.s32.totalorder %s47, 1
      %p348 = por %p346, %p347
      %p349 = scmp.ne.s32.totalorder %s340, %s341
      %p350 = scmp.eq.s32.totalorder %s47, 0
      %p351 = por %p349, %p350
      %p352 = scmp.ne.s32.totalorder %s340, %s341
      %p353 = scmp.eq.s32.totalorder %s48, 1
      %p354 = por %p352, %p353
      %p356 = scmp.ne.s32.totalorder %s341, %s355
      %p357 = scmp.eq.s32.totalorder %s48, 0
      %p358 = por %p356, %p357
      %s360 = sadd.s32 %s359, 1
      %p363 = scmp.eq.s32.totalorder %s42, 1
      %p364 = scmp.ne.s32.totalorder %s359, %s361
      %p365 = scmp.eq.s32.totalorder %s42, 0
      %p366 = por %p364, %p365
      %p367 = scmp.ne.s32.totalorder %s359, %s361
      %p368 = scmp.eq.s32.totalorder %s47, 1
      %p369 = por %p367, %p368
      %p370 = scmp.ne.s32.totalorder %s361, %s362
      %p371 = scmp.eq.s32.totalorder %s47, 0
      %p372 = por %p370, %p371
      %p373 = scmp.ne.s32.totalorder %s361, %s362
      %p374 = scmp.eq.s32.totalorder %s48, 1
      %p375 = por %p373, %p374
      %p377 = scmp.ne.s32.totalorder %s362, %s376
      %p378 = scmp.eq.s32.totalorder %s48, 0
      %p379 = por %p377, %p378
      %s381 = sadd.s32 %s380, 1
      %p384 = scmp.eq.s32.totalorder %s42, 1
      %p385 = scmp.ne.s32.totalorder %s380, %s382
      %p386 = scmp.eq.s32.totalorder %s42, 0
      %p387 = por %p385, %p386
      %p388 = scmp.ne.s32.totalorder %s380, %s382
      %p389 = scmp.eq.s32.totalorder %s47, 1
      %p390 = por %p388, %p389
      %p391 = scmp.ne.s32.totalorder %s382, %s383
      %p392 = scmp.eq.s32.totalorder %s47, 0
      %p393 = por %p391, %p392
      %p394 = scmp.ne.s32.totalorder %s382, %s383
      %p395 = scmp.eq.s32.totalorder %s48, 1
      %p396 = por %p394, %p395
      %p398 = scmp.ne.s32.totalorder %s383, %s397
      %p399 = scmp.eq.s32.totalorder %s48, 0
      %p400 = por %p398, %p399
      %s402 = sadd.s32 %s401, 1
      %p405 = scmp.eq.s32.totalorder %s42, 1
      %p406 = scmp.ne.s32.totalorder %s401, %s403
      %p407 = scmp.eq.s32.totalorder %s42, 0
      %p408 = por %p406, %p407
      %p409 = scmp.ne.s32.totalorder %s401, %s403
      %p410 = scmp.eq.s32.totalorder %s47, 1
      %p411 = por %p409, %p410
      %p412 = scmp.ne.s32.totalorder %s403, %s404
      %p413 = scmp.eq.s32.totalorder %s47, 0
      %p414 = por %p412, %p413
      %p415 = scmp.ne.s32.totalorder %s403, %s404
      %p416 = scmp.eq.s32.totalorder %s48, 1
      %p417 = por %p415, %p416
      %p419 = scmp.ne.s32.totalorder %s404, %s418
      %p420 = scmp.eq.s32.totalorder %s48, 0
      %p421 = por %p419, %p420
      %s423 = sadd.s32 %s422, 1
      %p426 = scmp.eq.s32.totalorder %s42, 1
      %p427 = scmp.ne.s32.totalorder %s422, %s424
      %p428 = scmp.eq.s32.totalorder %s42, 0
      %p429 = por %p427, %p428
      %p430 = scmp.ne.s32.totalorder %s422, %s424
      %p431 = scmp.eq.s32.totalorder %s47, 1
      %p432 = por %p430, %p431
      %p433 = scmp.ne.s32.totalorder %s424, %s425
      %p434 = scmp.eq.s32.totalorder %s47, 0
      %p435 = por %p433, %p434
      %p436 = scmp.ne.s32.totalorder %s424, %s425
      %p437 = scmp.eq.s32.totalorder %s48, 1
      %p438 = por %p436, %p437
      %p440 = scmp.ne.s32.totalorder %s425, %s439
      %p441 = scmp.eq.s32.totalorder %s48, 0
      %p442 = por %p440, %p441
      %s443 = ssub.s32 %s42, %s49
      %p444 = scmp.eq.s32.totalorder %s443, 0
      %s446 = sadd.s32 %s445, 1
      %s447 = scalar_select %p444, %s445, %s446
      %p450 = pneg %p444
      %p451 = scmp.eq.s32.totalorder %s42, 1
      %p452 = por %p450, %p451
      %p453 = scmp.ne.s32.totalorder %s445, %s448
      %p454 = scmp.eq.s32.totalorder %s42, 0
      %p455 = por %p453, %p454
      %p456 = scmp.ne.s32.totalorder %s445, %s448
      %p457 = scmp.eq.s32.totalorder %s47, 1
      %p458 = por %p456, %p457
      %p459 = scmp.ne.s32.totalorder %s448, %s449
      %p460 = scmp.eq.s32.totalorder %s47, 0
      %p461 = por %p459, %p460
      %p462 = scmp.ne.s32.totalorder %s448, %s449
      %p463 = scmp.eq.s32.totalorder %s48, 1
      %p464 = por %p462, %p463
      %p466 = scmp.ne.s32.totalorder %s449, %s465
      %p467 = scmp.eq.s32.totalorder %s48, 0
      %p468 = por %p466, %p467
      %s469 = ssub.s32 %s42, %s49
      %p470 = scmp.eq.s32.totalorder %s469, 0
      %s472 = sadd.s32 %s471, 1
      %s473 = scalar_select %p470, %s471, %s472
      %p476 = pneg %p470
      %p477 = scmp.eq.s32.totalorder %s42, 1
      %p478 = por %p476, %p477
      %p479 = scmp.ne.s32.totalorder %s471, %s474
      %p480 = scmp.eq.s32.totalorder %s42, 0
      %p481 = por %p479, %p480
      %p482 = scmp.ne.s32.totalorder %s471, %s474
      %p483 = scmp.eq.s32.totalorder %s47, 1
      %p484 = por %p482, %p483
      %p485 = scmp.ne.s32.totalorder %s474, %s475
      %p486 = scmp.eq.s32.totalorder %s47, 0
      %p487 = por %p485, %p486
      %p488 = scmp.ne.s32.totalorder %s474, %s475
      %p489 = scmp.eq.s32.totalorder %s48, 1
      %p490 = por %p488, %p489
      %p492 = scmp.ne.s32.totalorder %s475, %s491
      %p493 = scmp.eq.s32.totalorder %s48, 0
      %p494 = por %p492, %p493
      %p495 = scmp.le.s32.totalorder 1, %s42
      %p496 = scmp.lt.s32.totalorder %s42, 3
      %p497 = pnand %p495, %p496
      %p498 = pneg %p497
      // Predicated region
      $region9: #{tpu_custom_call.1} parent=5 // pred_check
        _
      $region10: #{tpu_custom_call.1} parent=5 // pred_check_branch
        %500 = sbr.rel (%p497) target = $region12
      $region11: #{tpu_custom_call.1} parent=5 // pred_region
        %s501 = ssub.s32 %s42, 1
        // Predicated region
        $region13: #{tpu_custom_call.1} parent=11 // pred_check
          %p502 = pneg %p141
        $region14: #{tpu_custom_call.1} parent=11 // pred_check_branch
          %504 = sbr.rel (%p502) target = $region16
        $region15: #{tpu_custom_call.1} parent=11 // pred_region
          %506 = vsyncadd [#allocation9], 0
          %s507 = sshll.u32 %s3, 4
          %s508 = int_to_ptr.hbm [resolvable:$true] %s507
          %s509 = sshll.u32 [#allocation8], 4
          %s510 = int_to_ptr.vmem [resolvable:$true] %s509
          %515 = dma.hbm_to_vmem [thread:$0]  %s508, 256, %s510, [#allocation9], 64, 64, 4
        $region16: #{tpu_custom_call.1} parent=11 // pred_fallthru
          _
        // Predicated region
        $region17: #{tpu_custom_call.1} parent=11 // pred_check
          %p516 = pneg %p162
        $region18: #{tpu_custom_call.1} parent=11 // pred_check_branch
          %518 = sbr.rel (%p516) target = $region20
        $region19: #{tpu_custom_call.1} parent=11 // pred_region
          %520 = vsyncadd [#allocation9], 0
          %s522 = sshll.u32 %s4, 4
          %s523 = int_to_ptr.hbm [resolvable:$true] %s522
          %s524 = sshll.u32 [#allocation10], 4
          %s525 = int_to_ptr.vmem [resolvable:$true] %s524
          %527 = dma.hbm_to_vmem [thread:$0]  %s523, 16, %s525, [#allocation9]
        $region20: #{tpu_custom_call.1} parent=11 // pred_fallthru
          _
        // Predicated region
        $region21: #{tpu_custom_call.1} parent=11 // pred_check
          %p528 = pneg %p183
        $region22: #{tpu_custom_call.1} parent=11 // pred_check_branch
          %530 = sbr.rel (%p528) target = $region24
        $region23: #{tpu_custom_call.1} parent=11 // pred_region
          %532 = vsyncadd [#allocation12], 0
          %s533 = sshll.u32 %s5, 4
          %s534 = int_to_ptr.hbm [resolvable:$true] %s533
          %s535 = sshll.u32 [#allocation11], 4
          %s536 = int_to_ptr.vmem [resolvable:$true] %s535
          %541 = dma.hbm_to_vmem [thread:$0]  %s534, 256, %s536, [#allocation12], 64, 64, 4
        $region24: #{tpu_custom_call.1} parent=11 // pred_fallthru
          _
        // Predicated region
        $region25: #{tpu_custom_call.1} parent=11 // pred_check
          %p542 = pneg %p204
        $region26: #{tpu_custom_call.1} parent=11 // pred_check_branch
          %544 = sbr.rel (%p542) target = $region28
        $region27: #{tpu_custom_call.1} parent=11 // pred_region
          %546 = vsyncadd [#allocation12], 0
          %s548 = sshll.u32 %s6, 4
          %s549 = int_to_ptr.hbm [resolvable:$true] %s548
          %s550 = sshll.u32 [#allocation13], 4
          %s551 = int_to_ptr.vmem [resolvable:$true] %s550
          %553 = dma.hbm_to_vmem [thread:$0]  %s549, 16, %s551, [#allocation12]
        $region28: #{tpu_custom_call.1} parent=11 // pred_fallthru
          _
        // Predicated region
        $region29: #{tpu_custom_call.1} parent=11 // pred_check
          %p554 = pneg %p225
        $region30: #{tpu_custom_call.1} parent=11 // pred_check_branch
          %556 = sbr.rel (%p554) target = $region32
        $region31: #{tpu_custom_call.1} parent=11 // pred_region
          %558 = vsyncadd [#allocation15], 0
          %s559 = sshll.u32 %s7, 4
          %s560 = int_to_ptr.hbm [resolvable:$true] %s559
          %s561 = sshll.u32 [#allocation14], 4
          %s562 = int_to_ptr.vmem [resolvable:$true] %s561
          %567 = dma.hbm_to_vmem [thread:$0]  %s560, 512, %s562, [#allocation15], 64, 64, 4
        $region32: #{tpu_custom_call.1} parent=11 // pred_fallthru
          _
        // Predicated region
        $region33: #{tpu_custom_call.1} parent=11 // pred_check
          %p568 = pneg %p246
        $region34: #{tpu_custom_call.1} parent=11 // pred_check_branch
          %570 = sbr.rel (%p568) target = $region36
        $region35: #{tpu_custom_call.1} parent=11 // pred_region
          _
        $region36: #{tpu_custom_call.1} parent=11 // pred_fallthru
          _
        // Predicated region
        $region37: #{tpu_custom_call.1} parent=11 // pred_check
          %p571 = pneg %p267
        $region38: #{tpu_custom_call.1} parent=11 // pred_check_branch
          %573 = sbr.rel (%p571) target = $region40
        $region39: #{tpu_custom_call.1} parent=11 // pred_region
          _
        $region40: #{tpu_custom_call.1} parent=11 // pred_fallthru
          _
        // Predicated region
        $region41: #{tpu_custom_call.1} parent=11 // pred_check
          %p574 = pneg %p288
        $region42: #{tpu_custom_call.1} parent=11 // pred_check_branch
          %576 = sbr.rel (%p574) target = $region44
        $region43: #{tpu_custom_call.1} parent=11 // pred_region
          _
        $region44: #{tpu_custom_call.1} parent=11 // pred_fallthru
          _
        // Predicated region
        $region45: #{tpu_custom_call.1} parent=11 // pred_check
          %p577 = pneg %p309
        $region46: #{tpu_custom_call.1} parent=11 // pred_check_branch
          %579 = sbr.rel (%p577) target = $region48
        $region47: #{tpu_custom_call.1} parent=11 // pred_region
          %581 = vsyncadd [#allocation15], 0
          %s582 = sshll.u32 %s11, 4
          %s583 = int_to_ptr.hbm [resolvable:$true] %s582
          %s584 = sshll.u32 [#allocation16], 4
          %s585 = int_to_ptr.vmem [resolvable:$true] %s584
          %590 = dma.hbm_to_vmem [thread:$0]  %s583, 256, %s585, [#allocation15], 64, 64, 4
        $region48: #{tpu_custom_call.1} parent=11 // pred_fallthru
          _
        // Predicated region
        $region49: #{tpu_custom_call.1} parent=11 // pred_check
          %p591 = pneg %p330
        $region50: #{tpu_custom_call.1} parent=11 // pred_check_branch
          %593 = sbr.rel (%p591) target = $region52
        $region51: #{tpu_custom_call.1} parent=11 // pred_region
          %595 = vsyncadd [#allocation18], 0
          %s596 = sshll.u32 %s12, 4
          %s597 = int_to_ptr.hbm [resolvable:$true] %s596
          %s598 = sshll.u32 [#allocation17], 4
          %s599 = int_to_ptr.vmem [resolvable:$true] %s598
          %604 = dma.hbm_to_vmem [thread:$0]  %s597, 256, %s599, [#allocation18], 64, 64, 4
        $region52: #{tpu_custom_call.1} parent=11 // pred_fallthru
          _
        // Predicated region
        $region53: #{tpu_custom_call.1} parent=11 // pred_check
          %p605 = pneg %p351
        $region54: #{tpu_custom_call.1} parent=11 // pred_check_branch
          %607 = sbr.rel (%p605) target = $region56
        $region55: #{tpu_custom_call.1} parent=11 // pred_region
          _
        $region56: #{tpu_custom_call.1} parent=11 // pred_fallthru
          _
        // Predicated region
        $region57: #{tpu_custom_call.1} parent=11 // pred_check
          %p608 = pneg %p372
        $region58: #{tpu_custom_call.1} parent=11 // pred_check_branch
          %610 = sbr.rel (%p608) target = $region60
        $region59: #{tpu_custom_call.1} parent=11 // pred_region
          %612 = vsyncadd [#allocation18], 0
          %s613 = sshll.u32 %s14, 4
          %s614 = int_to_ptr.hbm [resolvable:$true] %s613
          %s615 = sshll.u32 [#allocation19], 4
          %s616 = int_to_ptr.vmem [resolvable:$true] %s615
          %621 = dma.hbm_to_vmem [thread:$0]  %s614, 256, %s616, [#allocation18], 64, 64, 4
        $region60: #{tpu_custom_call.1} parent=11 // pred_fallthru
          _
        // Predicated region
        $region61: #{tpu_custom_call.1} parent=11 // pred_check
          %p622 = pneg %p393
        $region62: #{tpu_custom_call.1} parent=11 // pred_check_branch
          %624 = sbr.rel (%p622) target = $region64
        $region63: #{tpu_custom_call.1} parent=11 // pred_region
          _
        $region64: #{tpu_custom_call.1} parent=11 // pred_fallthru
          _
        // Predicated region
        $region65: #{tpu_custom_call.1} parent=11 // pred_check
          %p625 = pneg %p414
        $region66: #{tpu_custom_call.1} parent=11 // pred_check_branch
          %627 = sbr.rel (%p625) target = $region68
        $region67: #{tpu_custom_call.1} parent=11 // pred_region
          _
        $region68: #{tpu_custom_call.1} parent=11 // pred_fallthru
          _
        // Predicated region
        $region69: #{tpu_custom_call.1} parent=11 // pred_check
          %p628 = pneg %p435
        $region70: #{tpu_custom_call.1} parent=11 // pred_check_branch
          %630 = sbr.rel (%p628) target = $region72
        $region71: #{tpu_custom_call.1} parent=11 // pred_region
          _
        $region72: #{tpu_custom_call.1} parent=11 // pred_fallthru
          _
      $region12: #{tpu_custom_call.1} parent=5 // pred_fallthru
        _
      %p631 = scmp.lt.s32.totalorder %s42, 2
      // Predicated region
      $region73: #{tpu_custom_call.1} parent=5 // pred_check
        %p632 = pneg %p631
      $region74: #{tpu_custom_call.1} parent=5 // pred_check_branch
        %634 = sbr.rel (%p632) target = $region76
      $region75: #{tpu_custom_call.1} parent=5 // pred_region
        // Predicated region
        $region77: #{tpu_custom_call.1} parent=75 // pred_check
          %p635 = pneg %p62
        $region78: #{tpu_custom_call.1} parent=75 // pred_check_branch
          %637 = sbr.rel (%p635) target = $region80
        $region79: #{tpu_custom_call.1} parent=75 // pred_region
          %s638 = sand.u32 %s52, 1
          %s639 = scalar_lea.sflag [#allocation3], %s638
          %s640 = sand.u32 %s52, 1
          %s641 = scalar_lea.vmem [#allocation2], %s640
          %643 = vsyncadd %s639, 0
          %s644 = scalar_lea.hbm %s0, %s42
          %s646 = sshll.u32 %s644, 4
          %s647 = int_to_ptr.hbm [resolvable:$true] %s646
          %s648 = sshll.u32 %s641, 4
          %s649 = int_to_ptr.vmem [resolvable:$true] %s648
          %651 = dma.hbm_to_vmem [thread:$0]  %s647, 16, %s649, %s639
        $region80: #{tpu_custom_call.1} parent=75 // pred_fallthru
          _
        // Predicated region
        $region81: #{tpu_custom_call.1} parent=75 // pred_check
          %p652 = pneg %p88
        $region82: #{tpu_custom_call.1} parent=75 // pred_check_branch
          %654 = sbr.rel (%p652) target = $region84
        $region83: #{tpu_custom_call.1} parent=75 // pred_region
          %s655 = sand.u32 %s42, 1
          %s656 = scalar_lea.sflag [#allocation6], %s655
          %s657 = sand.u32 %s78, 1
          %s658 = smul.addr %s657, 8
          %s659 = scalar_lea.vmem [#allocation5], %s658
          %661 = vsyncadd %s656, 0
          %s662 = smul.addr %s42, 8
          %s663 = scalar_lea.hbm %s1, %s662
          %s665 = sshll.u32 %s663, 4
          %s666 = int_to_ptr.hbm [resolvable:$true] %s665
          %s667 = sshll.u32 %s659, 4
          %s668 = int_to_ptr.vmem [resolvable:$true] %s667
          %670 = dma.hbm_to_vmem [thread:$0]  %s666, 128, %s668, %s656
        $region84: #{tpu_custom_call.1} parent=75 // pred_fallthru
          _
        // Predicated region
        $region85: #{tpu_custom_call.1} parent=75 // pred_check
          %p671 = pneg %p114
        $region86: #{tpu_custom_call.1} parent=75 // pred_check_branch
          %673 = sbr.rel (%p671) target = $region88
        $region87: #{tpu_custom_call.1} parent=75 // pred_region
          %s674 = sand.u32 %s42, 1
          %s675 = scalar_lea.sflag [#allocation6], %s674
          %s676 = sand.u32 %s104, 1
          %s677 = smul.addr %s676, 8
          %s678 = scalar_lea.vmem [#allocation7], %s677
          %680 = vsyncadd %s675, 0
          %s681 = smul.addr %s42, 8
          %s682 = scalar_lea.hbm %s2, %s681
          %s684 = sshll.u32 %s682, 4
          %s685 = int_to_ptr.hbm [resolvable:$true] %s684
          %s686 = sshll.u32 %s678, 4
          %s687 = int_to_ptr.vmem [resolvable:$true] %s686
          %689 = dma.hbm_to_vmem [thread:$0]  %s685, 128, %s687, %s675
        $region88: #{tpu_custom_call.1} parent=75 // pred_fallthru
          _
      $region76: #{tpu_custom_call.1} parent=5 // pred_fallthru
        _
      %p690 = scmp.le.s32.totalorder 1, %s42
      %p691 = scmp.lt.s32.totalorder %s42, 3
      %p692 = pnand %p690, %p691
      %p693 = pneg %p692
      // Predicated region
      $region89: #{tpu_custom_call.1} parent=5 // pred_check
        _
      $region90: #{tpu_custom_call.1} parent=5 // pred_check_branch
        %695 = sbr.rel (%p692) target = $region92
      $region91: #{tpu_custom_call.1} parent=5 // pred_region
        %s696 = ssub.s32 %s42, 1
        %s697 = sand.u32 %s55, 1
        %s698 = scalar_lea.sflag [#allocation3], %s697
        %s699 = sand.u32 %s55, 1
        %s700 = scalar_lea.vmem [#allocation2], %s699
        // Predicated region
        $region93: #{tpu_custom_call.1} parent=91 // pred_check
          %p701 = pneg %p68
        $region94: #{tpu_custom_call.1} parent=91 // pred_check_branch
          %703 = sbr.rel (%p701) target = $region96
        $region95: #{tpu_custom_call.1} parent=91 // pred_region
          %705 = dma.done %s698, 16
        $region96: #{tpu_custom_call.1} parent=91 // pred_fallthru
          _
        %s706 = sand.u32 %s47, 1
        %s707 = scalar_lea.sflag [#allocation6], %s706
        %s708 = sand.u32 %s81, 1
        %s709 = smul.addr %s708, 8
        %s710 = scalar_lea.vmem [#allocation5], %s709
        // Predicated region
        $region97: #{tpu_custom_call.1} parent=91 // pred_check
          %p711 = pneg %p94
        $region98: #{tpu_custom_call.1} parent=91 // pred_check_branch
          %713 = sbr.rel (%p711) target = $region100
        $region99: #{tpu_custom_call.1} parent=91 // pred_region
          %715 = dma.done %s707, 128
        $region100: #{tpu_custom_call.1} parent=91 // pred_fallthru
          _
        %s716 = sand.u32 %s47, 1
        %s717 = scalar_lea.sflag [#allocation6], %s716
        %s718 = sand.u32 %s107, 1
        %s719 = smul.addr %s718, 8
        %s720 = scalar_lea.vmem [#allocation7], %s719
        // Predicated region
        $region101: #{tpu_custom_call.1} parent=91 // pred_check
          %p721 = pneg %p120
        $region102: #{tpu_custom_call.1} parent=91 // pred_check_branch
          %723 = sbr.rel (%p721) target = $region104
        $region103: #{tpu_custom_call.1} parent=91 // pred_region
          %725 = dma.done %s717, 128
        $region104: #{tpu_custom_call.1} parent=91 // pred_fallthru
          _
        // Predicated region
        $region105: #{tpu_custom_call.1} parent=91 // pred_check
          %p726 = pneg %p141
        $region106: #{tpu_custom_call.1} parent=91 // pred_check_branch
          %728 = sbr.rel (%p726) target = $region108
        $region107: #{tpu_custom_call.1} parent=91 // pred_region
          %730 = dma.done [#allocation9], 256
        $region108: #{tpu_custom_call.1} parent=91 // pred_fallthru
          _
        // Predicated region
        $region109: #{tpu_custom_call.1} parent=91 // pred_check
          %p731 = pneg %p162
        $region110: #{tpu_custom_call.1} parent=91 // pred_check_branch
          %733 = sbr.rel (%p731) target = $region112
        $region111: #{tpu_custom_call.1} parent=91 // pred_region
          %735 = dma.done [#allocation9], 16
        $region112: #{tpu_custom_call.1} parent=91 // pred_fallthru
          _
        // Predicated region
        $region113: #{tpu_custom_call.1} parent=91 // pred_check
          %p736 = pneg %p183
        $region114: #{tpu_custom_call.1} parent=91 // pred_check_branch
          %738 = sbr.rel (%p736) target = $region116
        $region115: #{tpu_custom_call.1} parent=91 // pred_region
          %740 = dma.done [#allocation12], 256
        $region116: #{tpu_custom_call.1} parent=91 // pred_fallthru
          _
        // Predicated region
        $region117: #{tpu_custom_call.1} parent=91 // pred_check
          %p741 = pneg %p204
        $region118: #{tpu_custom_call.1} parent=91 // pred_check_branch
          %743 = sbr.rel (%p741) target = $region120
        $region119: #{tpu_custom_call.1} parent=91 // pred_region
          %745 = dma.done [#allocation12], 16
        $region120: #{tpu_custom_call.1} parent=91 // pred_fallthru
          _
        // Predicated region
        $region121: #{tpu_custom_call.1} parent=91 // pred_check
          %p746 = pneg %p225
        $region122: #{tpu_custom_call.1} parent=91 // pred_check_branch
          %748 = sbr.rel (%p746) target = $region124
        $region123: #{tpu_custom_call.1} parent=91 // pred_region
          %750 = dma.done [#allocation15], 512
        $region124: #{tpu_custom_call.1} parent=91 // pred_fallthru
          _
        // Predicated region
        $region125: #{tpu_custom_call.1} parent=91 // pred_check
          %p751 = pneg %p309
        $region126: #{tpu_custom_call.1} parent=91 // pred_check_branch
          %753 = sbr.rel (%p751) target = $region128
        $region127: #{tpu_custom_call.1} parent=91 // pred_region
          %755 = dma.done [#allocation15], 256
        $region128: #{tpu_custom_call.1} parent=91 // pred_fallthru
          _
        // Predicated region
        $region129: #{tpu_custom_call.1} parent=91 // pred_check
          %p756 = pneg %p330
        $region130: #{tpu_custom_call.1} parent=91 // pred_check_branch
          %758 = sbr.rel (%p756) target = $region132
        $region131: #{tpu_custom_call.1} parent=91 // pred_region
          %760 = dma.done [#allocation18], 256
        $region132: #{tpu_custom_call.1} parent=91 // pred_fallthru
          _
        // Predicated region
        $region133: #{tpu_custom_call.1} parent=91 // pred_check
          %p761 = pneg %p372
        $region134: #{tpu_custom_call.1} parent=91 // pred_check_branch
          %763 = sbr.rel (%p761) target = $region136
        $region135: #{tpu_custom_call.1} parent=91 // pred_region
          %765 = dma.done [#allocation18], 256
        $region136: #{tpu_custom_call.1} parent=91 // pred_fallthru
          _
        %s766 = sand.u32 %s55, 1
        %s767 = scalar_lea.sflag [#allocation3], %s766
        %s768 = sand.u32 %s55, 1
        %s769 = scalar_lea.vmem [#allocation2], %s768
        %p770 = pneg %p68
        %p771 = pneg %p65
        %s772 = sand.u32 %s47, 1
        %s773 = scalar_lea.sflag [#allocation6], %s772
        %s774 = sand.u32 %s81, 1
        %s775 = smul.addr %s774, 8
        %s776 = scalar_lea.vmem [#allocation5], %s775
        %p777 = pneg %p94
        %p778 = pneg %p91
        %s779 = sand.u32 %s47, 1
        %s780 = scalar_lea.sflag [#allocation6], %s779
        %s781 = sand.u32 %s107, 1
        %s782 = smul.addr %s781, 8
        %s783 = scalar_lea.vmem [#allocation7], %s782
        %p784 = pneg %p120
        %p785 = pneg %p117
        %p786 = pneg %p141
        %p787 = pneg %p138
        %p788 = pneg %p162
        %p789 = pneg %p159
        %p790 = pneg %p183
        %p791 = pneg %p180
        %p792 = pneg %p204
        %p793 = pneg %p201
        %p794 = pneg %p225
        %p795 = pneg %p222
        %p796 = pneg %p246
        %p797 = pneg %p243
        %p798 = pneg %p267
        %p799 = pneg %p264
        %p800 = pneg %p288
        %p801 = pneg %p285
        %p802 = pneg %p309
        %p803 = pneg %p306
        %p804 = pneg %p330
        %p805 = pneg %p327
        %p806 = pneg %p351
        %p807 = pneg %p348
        %p808 = pneg %p372
        %p809 = pneg %p369
        %p810 = pneg %p393
        %p811 = pneg %p390
        %p812 = pneg %p414
        %p813 = pneg %p411
        %p814 = pneg %p435
        %p815 = pneg %p432
        %p816 = pneg %p461
        %p817 = pneg %p458
        %s818 = sand.u32 %s448, 1
        %s819 = scalar_lea.sflag [#allocation4], %s818
        %s820 = sand.u32 %s448, 1
        %s821 = smul.addr %s820, 8
        %s822 = scalar_lea.vmem [#allocation20], %s821
        %p823 = pneg %p487
        %p824 = pneg %p484
        %s825 = sand.u32 %s474, 1
        %s826 = scalar_lea.sflag [#allocation22], %s825
        %s827 = sand.u32 %s474, 1
        %s828 = smul.addr %s827, 8
        %s829 = scalar_lea.vmem [#allocation21], %s828
        %v831 = vld [vmem:[#allocation8] sm:$0xf]
        %v832 = vld [vmem:[#allocation8 + $0x4] sm:$0xf]
        %v833 = vld [vmem:[#allocation8 + $0x8] sm:$0xf]
        %v834 = vld [vmem:[#allocation8 + $0xc] sm:$0xf]
        %v835 = vld [vmem:[#allocation11] sm:$0xf]
        %v836 = vld [vmem:[#allocation11 + $0x4] sm:$0xf]
        %v837 = vld [vmem:[#allocation11 + $0x8] sm:$0xf]
        %v838 = vld [vmem:[#allocation11 + $0xc] sm:$0xf]
        %v839 = vld [vmem:[#allocation14] sm:$0xf]
        %v840 = vld [vmem:[#allocation14 + $0x4] sm:$0xf]
        %v841 = vld [vmem:[#allocation14 + $0x8] sm:$0xf]
        %v842 = vld [vmem:[#allocation14 + $0xc] sm:$0xf]
        %s843 = scalar_lea.vmem [#allocation14], 16
        %v844 = vld [vmem:[%s843] sm:$0xf]
        %v845 = vld [vmem:[%s843 + $0x4] sm:$0xf]
        %v846 = vld [vmem:[%s843 + $0x8] sm:$0xf]
        %v847 = vld [vmem:[%s843 + $0xc] sm:$0xf]
        %v848 = vld [vmem:[#allocation16] sm:$0xf]
        %v849 = vld [vmem:[#allocation16 + $0x4] sm:$0xf]
        %v850 = vld [vmem:[#allocation16 + $0x8] sm:$0xf]
        %v851 = vld [vmem:[#allocation16 + $0xc] sm:$0xf]
        %v852 = vld [vmem:[#allocation17] sm:$0xf]
        %v853 = vld [vmem:[#allocation17 + $0x4] sm:$0xf]
        %v854 = vld [vmem:[#allocation17 + $0x8] sm:$0xf]
        %v855 = vld [vmem:[#allocation17 + $0xc] sm:$0xf]
        %v856 = vld [vmem:[#allocation19] sm:$0xf]
        %v857 = vld [vmem:[#allocation19 + $0x4] sm:$0xf]
        %v858 = vld [vmem:[#allocation19 + $0x8] sm:$0xf]
        %v859 = vld [vmem:[#allocation19 + $0xc] sm:$0xf]
        %v860 = vld [vmem:[%s710] sm:$0xff]
        %v861 = vld [vmem:[%s720] sm:$0xff]
        %v862 = vld [vmem:[%s700] sm:$0x1]
        %v863 = vsub.f32 1.0, %v862
        %v864 = vmul.f32 %v863, -10000.0
        %v865 = vpack.c.bf16 %v860, %v860
        %v866 = vld [vmem:[#allocation10] sm:$0x1]
        %v868 = vperm.slane %v866, 0
        %v874 = vunpack.c.l.b16 %v831
        %v875 = vunpack.c.l.b16 %v832
        %v876 = vunpack.c.l.b16 %v833
        %v877 = vunpack.c.l.b16 %v834
        %v878 = vpack.c.b16 %v875, %v874
        %v879 = vpack.c.b16 %v877, %v876
        %vm882 = vcmask 261120
        %v884 = vsel %vm882, %v865, 0
        %886 = vmatpush.bf16.msra.mxu0 0
        %887 = vmatpush.bf16.msra.mxu0 0
        %888 = vmatpush.bf16.msra.mxu0 0
        %889 = vmatpush.bf16.msra.mxu0 0
        %890 = vmatpush.bf16.msra.mxu0 0
        %891 = vmatpush.bf16.msra.mxu0 0
        %892 = vmatpush.bf16.msra.mxu0 %v879
        %893 = vmatpush.bf16.msra.mxu0 %v878
        %894 = vmatmul.bf16.gmra.mxu0 %v884
        %v895 = vpop.f32.mrf.mxu0
        %v896 = vadd.f32 %v868, %v895
        %v897 = vpop.f32.mrf.mxu0
        %898 = vdwg.mxu0
        %v899 = vpack.c.bf16 %v861, %v861
        %v900 = vld [vmem:[#allocation13] sm:$0x1]
        %v902 = vperm.slane %v900, 0
        %v908 = vunpack.c.l.b16 %v835
        %v909 = vunpack.c.l.b16 %v836
        %v910 = vunpack.c.l.b16 %v837
        %v911 = vunpack.c.l.b16 %v838
        %v912 = vpack.c.b16 %v909, %v908
        %v913 = vpack.c.b16 %v911, %v910
        %v917 = vsel %vm882, %v899, 0
        %919 = vmatpush.bf16.msra.mxu0 0
        %920 = vmatpush.bf16.msra.mxu0 0
        %921 = vmatpush.bf16.msra.mxu0 0
        %922 = vmatpush.bf16.msra.mxu0 0
        %923 = vmatpush.bf16.msra.mxu0 0
        %924 = vmatpush.bf16.msra.mxu0 0
        %925 = vmatpush.bf16.msra.mxu0 %v913
        %926 = vmatpush.bf16.msra.mxu0 %v912
        %927 = vmatmul.bf16.gmra.mxu0 %v917
        %v928 = vpop.f32.mrf.mxu0
        %v929 = vadd.f32 %v902, %v928
        %v930 = vpop.f32.mrf.mxu0
        %931 = vdwg.mxu0
        %v932 = vmul.f32 %v896, 0.35355338
        %v933 = vmul.f32 %v929, 0.35355338
        %v934 = vpack.c.bf16 %v932, %v932
        %v935 = vpack.c.bf16 %v929, %v929
        %v937 = vperm.slane %v864, 0
        %vm939 = vcmask 64512
        %v941 = vsel %vm939, %v934, 0
        %v944 = vsel %vm939, %v935, 0
        %946 = vmatpush.bf16.xpose.msra.mxu0 0
        %947 = vmatpush.bf16.xpose.msra.mxu0 0
        %948 = vmatpush.bf16.xpose.msra.mxu0 0
        %949 = vmatpush.bf16.xpose.msra.mxu0 0
        %950 = vmatpush.bf16.xpose.msra.mxu0 0
        %951 = vmatpush.bf16.xpose.msra.mxu0 0
        %952 = vmatpush.bf16.xpose.msra.mxu0 0
        %953 = vmatpush.bf16.xpose.msra.mxu0 %v944
        %954 = vmatmul.bf16.gmra.mxu0 %v941
        %v955 = vpop.f32.mrf.mxu0
        %v956 = vadd.f32 %v937, %v955
        %v957 = vpop.f32.mrf.mxu0
        %958 = vdwg.mxu0
        %v959 = vsel %vm939, %v956, -inf
        %960 = vmax.xlane.f32.xlu0 %v959
        %v961 = vpop.xlane.xlu0 %960
        %v962 = vsub.f32 %v956, %v961
        %v963 = vmul.f32 %v962, 1.442695
        %v964 = vpow.pop %v963
        %v965 = vsel %vm939, %v964, 0.0
        %966 = vadd.xlane.f32.xlu0 %v965
        %v967 = vpop.xlane.xlu0 %966
        %v968 = vrcp.pop %v967
        %v969 = vmul.f32 %v964, %v968
        %v970 = vpack.c.bf16 %v969, %v969
        %v972 = vunpack.c.l.b16 %v935
        %v973 = vpack.c.b16 %v972, %v972
        %974 = vrot.lane.b32.xlu0 %v973, 96
        %v975 = vpop.permute.xlu0 %974
        %v977 = vsel %vm939, %v970, 0
        %vm979 = vcmask 1043456
        %v981 = vsel %vm979, %v975, 0
        %983 = vmatpush.bf16.msra.mxu0 0
        %984 = vmatpush.bf16.msra.mxu0 0
        %985 = vmatpush.bf16.msra.mxu0 0
        %986 = vmatpush.bf16.msra.mxu0 0
        %987 = vmatpush.bf16.msra.mxu0 0
        %988 = vmatpush.bf16.msra.mxu0 0
        %989 = vmatpush.bf16.msra.mxu0 0
        %990 = vmatpush.bf16.msra.mxu0 %v981
        %991 = vmatmul.bf16.gmra.mxu0 %v977
        %v992 = vpop.f32.mrf.mxu0
        %v993 = vadd.f32 0.0, %v992
        %v994 = vpop.f32.mrf.mxu0
        %995 = vdwg.mxu0
        %v996 = vpack.c.bf16 %v993, %v993
        %v998 = vunpack.c.l.b16 %v934
        %v999 = vpack.c.b16 %v998, %v998
        %1000 = vrot.lane.b32.xlu0 %v999, 120
        %v1001 = vpop.permute.xlu0 %1000
        %1002 = vrot.lane.b32.xlu0 %v973, 120
        %v1003 = vpop.permute.xlu0 %1002
        %v1005 = vsel %vm939, %v1001, 0
        %v1008 = vsel %vm939, %v1003, 0
        %1010 = vmatpush.bf16.xpose.msra.mxu0 0
        %1011 = vmatpush.bf16.xpose.msra.mxu0 0
        %1012 = vmatpush.bf16.xpose.msra.mxu0 0
        %1013 = vmatpush.bf16.xpose.msra.mxu0 0
        %1014 = vmatpush.bf16.xpose.msra.mxu0 0
        %1015 = vmatpush.bf16.xpose.msra.mxu0 0
        %1016 = vmatpush.bf16.xpose.msra.mxu0 0
        %1017 = vmatpush.bf16.xpose.msra.mxu0 %v1008
        %1018 = vmatmul.bf16.gmra.mxu0 %v1005
        %v1019 = vpop.f32.mrf.mxu0
        %v1020 = vadd.f32 %v937, %v1019
        %v1021 = vpop.f32.mrf.mxu0
        %1022 = vdwg.mxu0
        %v1023 = vsel %vm939, %v1020, -inf
        %1024 = vmax.xlane.f32.xlu0 %v1023
        %v1025 = vpop.xlane.xlu0 %1024
        %v1026 = vsub.f32 %v1020, %v1025
        %v1027 = vmul.f32 %v1026, 1.442695
        %v1028 = vpow.pop %v1027
        %v1029 = vsel %vm939, %v1028, 0.0
        %1030 = vadd.xlane.f32.xlu0 %v1029
        %v1031 = vpop.xlane.xlu0 %1030
        %v1032 = vrcp.pop %v1031
        %v1033 = vmul.f32 %v1028, %v1032
        %v1034 = vpack.c.bf16 %v1033, %v1033
        %1035 = vrot.lane.b32.xlu0 %v973, 88
        %v1036 = vpop.permute.xlu0 %1035
        %v1038 = vsel %vm939, %v1034, 0
        %v1041 = vsel %vm979, %v1036, 0
        %1043 = vmatpush.bf16.msra.mxu0 0
        %1044 = vmatpush.bf16.msra.mxu0 0
        %1045 = vmatpush.bf16.msra.mxu0 0
        %1046 = vmatpush.bf16.msra.mxu0 0
        %1047 = vmatpush.bf16.msra.mxu0 0
        %1048 = vmatpush.bf16.msra.mxu0 0
        %1049 = vmatpush.bf16.msra.mxu0 0
        %1050 = vmatpush.bf16.msra.mxu0 %v1041
        %1051 = vmatmul.bf16.gmra.mxu0 %v1038
        %v1052 = vpop.f32.mrf.mxu0
        %v1053 = vadd.f32 0.0, %v1052
        %v1054 = vpop.f32.mrf.mxu0
        %1055 = vdwg.mxu0
        %v1056 = vpack.c.bf16 %v1053, %v1053
        %v1058 = vsel %vm939, %v1056, 0
        %v1061 = vsel %vm979, %v840, 0
        %1063 = vmatpush.bf16.msra.mxu0 0
        %1064 = vmatpush.bf16.msra.mxu0 0
        %1065 = vmatpush.bf16.msra.mxu0 0
        %1066 = vmatpush.bf16.msra.mxu0 0
        %1067 = vmatpush.bf16.msra.mxu0 0
        %1068 = vmatpush.bf16.msra.mxu0 0
        %1069 = vmatpush.bf16.msra.mxu0 0
        %1070 = vmatpush.bf16.msra.mxu0 %v1061
        %1071 = vmatmul.bf16.gmra.mxu0 %v1058
        %v1072 = vpop.f32.mrf.mxu0
        %v1073 = vadd.f32 0.0, %v1072
        %v1074 = vpop.f32.mrf.mxu0
        %1075 = vdwg.mxu0
        %v1077 = vsel %vm939, %v996, 0
        %v1080 = vsel %vm979, %v839, 0
        %1082 = vmatpush.bf16.msra.mxu0 0
        %1083 = vmatpush.bf16.msra.mxu0 0
        %1084 = vmatpush.bf16.msra.mxu0 0
        %1085 = vmatpush.bf16.msra.mxu0 0
        %1086 = vmatpush.bf16.msra.mxu0 0
        %1087 = vmatpush.bf16.msra.mxu0 0
        %1088 = vmatpush.bf16.msra.mxu0 0
        %1089 = vmatpush.bf16.msra.mxu0 %v1080
        %1090 = vmatmul.bf16.gmra.mxu0 %v1077
        %v1091 = vpop.f32.mrf.mxu0
        %v1092 = vadd.f32 %v1073, %v1091
        %v1093 = vpop.f32.mrf.mxu0
        %1094 = vdwg.mxu0
        %1095 = vrot.lane.b32.xlu0 %v999, 112
        %v1096 = vpop.permute.xlu0 %1095
        %1097 = vrot.lane.b32.xlu0 %v973, 112
        %v1098 = vpop.permute.xlu0 %1097
        %v1100 = vsel %vm939, %v1096, 0
        %v1103 = vsel %vm939, %v1098, 0
        %1105 = vmatpush.bf16.xpose.msra.mxu0 0
        %1106 = vmatpush.bf16.xpose.msra.mxu0 0
        %1107 = vmatpush.bf16.xpose.msra.mxu0 0
        %1108 = vmatpush.bf16.xpose.msra.mxu0 0
        %1109 = vmatpush.bf16.xpose.msra.mxu0 0
        %1110 = vmatpush.bf16.xpose.msra.mxu0 0
        %1111 = vmatpush.bf16.xpose.msra.mxu0 0
        %1112 = vmatpush.bf16.xpose.msra.mxu0 %v1103
        %1113 = vmatmul.bf16.gmra.mxu0 %v1100
        %v1114 = vpop.f32.mrf.mxu0
        %v1115 = vadd.f32 %v937, %v1114
        %v1116 = vpop.f32.mrf.mxu0
        %1117 = vdwg.mxu0
        %v1118 = vsel %vm939, %v1115, -inf
        %1119 = vmax.xlane.f32.xlu0 %v1118
        %v1120 = vpop.xlane.xlu0 %1119
        %v1121 = vsub.f32 %v1115, %v1120
        %v1122 = vmul.f32 %v1121, 1.442695
        %v1123 = vpow.pop %v1122
        %v1124 = vsel %vm939, %v1123, 0.0
        %1125 = vadd.xlane.f32.xlu0 %v1124
        %v1126 = vpop.xlane.xlu0 %1125
        %v1127 = vrcp.pop %v1126
        %v1128 = vmul.f32 %v1123, %v1127
        %v1129 = vpack.c.bf16 %v1128, %v1128
        %1130 = vrot.lane.b32.xlu0 %v973, 80
        %v1131 = vpop.permute.xlu0 %1130
        %v1133 = vsel %vm939, %v1129, 0
        %v1136 = vsel %vm979, %v1131, 0
        %1138 = vmatpush.bf16.msra.mxu0 0
        %1139 = vmatpush.bf16.msra.mxu0 0
        %1140 = vmatpush.bf16.msra.mxu0 0
        %1141 = vmatpush.bf16.msra.mxu0 0
        %1142 = vmatpush.bf16.msra.mxu0 0
        %1143 = vmatpush.bf16.msra.mxu0 0
        %1144 = vmatpush.bf16.msra.mxu0 0
        %1145 = vmatpush.bf16.msra.mxu0 %v1136
        %1146 = vmatmul.bf16.gmra.mxu0 %v1133
        %v1147 = vpop.f32.mrf.mxu0
        %v1148 = vadd.f32 0.0, %v1147
        %v1149 = vpop.f32.mrf.mxu0
        %1150 = vdwg.mxu0
        %v1151 = vpack.c.bf16 %v1148, %v1148
        %v1153 = vsel %vm939, %v1151, 0
        %v1156 = vsel %vm979, %v841, 0
        %1158 = vmatpush.bf16.msra.mxu0 0
        %1159 = vmatpush.bf16.msra.mxu0 0
        %1160 = vmatpush.bf16.msra.mxu0 0
        %1161 = vmatpush.bf16.msra.mxu0 0
        %1162 = vmatpush.bf16.msra.mxu0 0
        %1163 = vmatpush.bf16.msra.mxu0 0
        %1164 = vmatpush.bf16.msra.mxu0 0
        %1165 = vmatpush.bf16.msra.mxu0 %v1156
        %1166 = vmatmul.bf16.gmra.mxu0 %v1153
        %v1167 = vpop.f32.mrf.mxu0
        %v1168 = vadd.f32 0.0, %v1167
        %v1169 = vpop.f32.mrf.mxu0
        %1170 = vdwg.mxu0
        %v1171 = vadd.f32 %v1092, %v1168
        %1172 = vrot.lane.b32.xlu0 %v999, 104
        %v1173 = vpop.permute.xlu0 %1172
        %1174 = vrot.lane.b32.xlu0 %v973, 104
        %v1175 = vpop.permute.xlu0 %1174
        %v1177 = vsel %vm939, %v1173, 0
        %v1180 = vsel %vm939, %v1175, 0
        %1182 = vmatpush.bf16.xpose.msra.mxu0 0
        %1183 = vmatpush.bf16.xpose.msra.mxu0 0
        %1184 = vmatpush.bf16.xpose.msra.mxu0 0
        %1185 = vmatpush.bf16.xpose.msra.mxu0 0
        %1186 = vmatpush.bf16.xpose.msra.mxu0 0
        %1187 = vmatpush.bf16.xpose.msra.mxu0 0
        %1188 = vmatpush.bf16.xpose.msra.mxu0 0
        %1189 = vmatpush.bf16.xpose.msra.mxu0 %v1180
        %1190 = vmatmul.bf16.gmra.mxu0 %v1177
        %v1191 = vpop.f32.mrf.mxu0
        %v1192 = vadd.f32 %v937, %v1191
        %v1193 = vpop.f32.mrf.mxu0
        %1194 = vdwg.mxu0
        %v1195 = vsel %vm939, %v1192, -inf
        %1196 = vmax.xlane.f32.xlu0 %v1195
        %v1197 = vpop.xlane.xlu0 %1196
        %v1198 = vsub.f32 %v1192, %v1197
        %v1199 = vmul.f32 %v1198, 1.442695
        %v1200 = vpow.pop %v1199
        %v1201 = vsel %vm939, %v1200, 0.0
        %1202 = vadd.xlane.f32.xlu0 %v1201
        %v1203 = vpop.xlane.xlu0 %1202
        %v1204 = vrcp.pop %v1203
        %v1205 = vmul.f32 %v1200, %v1204
        %v1206 = vpack.c.bf16 %v1205, %v1205
        %1207 = vrot.lane.b32.xlu0 %v973, 72
        %v1208 = vpop.permute.xlu0 %1207
        %v1210 = vsel %vm939, %v1206, 0
        %v1213 = vsel %vm979, %v1208, 0
        %1215 = vmatpush.bf16.msra.mxu0 0
        %1216 = vmatpush.bf16.msra.mxu0 0
        %1217 = vmatpush.bf16.msra.mxu0 0
        %1218 = vmatpush.bf16.msra.mxu0 0
        %1219 = vmatpush.bf16.msra.mxu0 0
        %1220 = vmatpush.bf16.msra.mxu0 0
        %1221 = vmatpush.bf16.msra.mxu0 0
        %1222 = vmatpush.bf16.msra.mxu0 %v1213
        %1223 = vmatmul.bf16.gmra.mxu0 %v1210
        %v1224 = vpop.f32.mrf.mxu0
        %v1225 = vadd.f32 0.0, %v1224
        %v1226 = vpop.f32.mrf.mxu0
        %1227 = vdwg.mxu0
        %v1228 = vpack.c.bf16 %v1225, %v1225
        %v1230 = vsel %vm939, %v1228, 0
        %v1233 = vsel %vm979, %v842, 0
        %1235 = vmatpush.bf16.msra.mxu0 0
        %1236 = vmatpush.bf16.msra.mxu0 0
        %1237 = vmatpush.bf16.msra.mxu0 0
        %1238 = vmatpush.bf16.msra.mxu0 0
        %1239 = vmatpush.bf16.msra.mxu0 0
        %1240 = vmatpush.bf16.msra.mxu0 0
        %1241 = vmatpush.bf16.msra.mxu0 0
        %1242 = vmatpush.bf16.msra.mxu0 %v1233
        %1243 = vmatmul.bf16.gmra.mxu0 %v1230
        %v1244 = vpop.f32.mrf.mxu0
        %v1245 = vadd.f32 0.0, %v1244
        %v1246 = vpop.f32.mrf.mxu0
        %1247 = vdwg.mxu0
        %v1248 = vadd.f32 %v1171, %v1245
        %v1249 = vld [vmem:[%s8] sm:$0x1]
        %v1251 = vperm.slane %v1249, 0
        %v1253 = vadd.f32 %v1248, %v1251
        %v1254 = vpack.c.bf16 %v933, %v933
        %v1255 = vpack.c.bf16 %v896, %v896
        %v1257 = vunpack.c.l.b16 %v1254
        %v1258 = vpack.c.b16 %v1257, %v1257
        %1259 = vrot.lane.b32.xlu0 %v1258, 64
        %v1260 = vpop.permute.xlu0 %1259
        %v1262 = vunpack.c.l.b16 %v1255
        %v1263 = vpack.c.b16 %v1262, %v1262
        %1264 = vrot.lane.b32.xlu0 %v1263, 96
        %v1265 = vpop.permute.xlu0 %1264
        %v1267 = vsel %vm939, %v1260, 0
        %v1270 = vsel %vm939, %v1265, 0
        %1272 = vmatpush.bf16.xpose.msra.mxu0 0
        %1273 = vmatpush.bf16.xpose.msra.mxu0 0
        %1274 = vmatpush.bf16.xpose.msra.mxu0 0
        %1275 = vmatpush.bf16.xpose.msra.mxu0 0
        %1276 = vmatpush.bf16.xpose.msra.mxu0 0
        %1277 = vmatpush.bf16.xpose.msra.mxu0 0
        %1278 = vmatpush.bf16.xpose.msra.mxu0 0
        %1279 = vmatpush.bf16.xpose.msra.mxu0 %v1270
        %1280 = vmatmul.bf16.gmra.mxu0 %v1267
        %v1281 = vpop.f32.mrf.mxu0
        %v1282 = vadd.f32 %v937, %v1281
        %v1283 = vpop.f32.mrf.mxu0
        %1284 = vdwg.mxu0
        %v1285 = vsel %vm939, %v1282, -inf
        %1286 = vmax.xlane.f32.xlu0 %v1285
        %v1287 = vpop.xlane.xlu0 %1286
        %v1288 = vsub.f32 %v1282, %v1287
        %v1289 = vmul.f32 %v1288, 1.442695
        %v1290 = vpow.pop %v1289
        %v1291 = vsel %vm939, %v1290, 0.0
        %1292 = vadd.xlane.f32.xlu0 %v1291
        %v1293 = vpop.xlane.xlu0 %1292
        %v1294 = vrcp.pop %v1293
        %v1295 = vmul.f32 %v1290, %v1294
        %v1296 = vpack.c.bf16 %v1295, %v1295
        %1297 = vrot.lane.b32.xlu0 %v1263, 64
        %v1298 = vpop.permute.xlu0 %1297
        %v1300 = vsel %vm939, %v1296, 0
        %v1303 = vsel %vm979, %v1298, 0
        %1305 = vmatpush.bf16.msra.mxu0 0
        %1306 = vmatpush.bf16.msra.mxu0 0
        %1307 = vmatpush.bf16.msra.mxu0 0
        %1308 = vmatpush.bf16.msra.mxu0 0
        %1309 = vmatpush.bf16.msra.mxu0 0
        %1310 = vmatpush.bf16.msra.mxu0 0
        %1311 = vmatpush.bf16.msra.mxu0 0
        %1312 = vmatpush.bf16.msra.mxu0 %v1303
        %1313 = vmatmul.bf16.gmra.mxu0 %v1300
        %v1314 = vpop.f32.mrf.mxu0
        %v1315 = vadd.f32 0.0, %v1314
        %v1316 = vpop.f32.mrf.mxu0
        %1317 = vdwg.mxu0
        %v1318 = vpack.c.bf16 %v1315, %v1315
        %1319 = vrot.lane.b32.xlu0 %v1258, 56
        %v1320 = vpop.permute.xlu0 %1319
        %1321 = vrot.lane.b32.xlu0 %v1263, 88
        %v1322 = vpop.permute.xlu0 %1321
        %v1324 = vsel %vm939, %v1320, 0
        %v1327 = vsel %vm939, %v1322, 0
        %1329 = vmatpush.bf16.xpose.msra.mxu0 0
        %1330 = vmatpush.bf16.xpose.msra.mxu0 0
        %1331 = vmatpush.bf16.xpose.msra.mxu0 0
        %1332 = vmatpush.bf16.xpose.msra.mxu0 0
        %1333 = vmatpush.bf16.xpose.msra.mxu0 0
        %1334 = vmatpush.bf16.xpose.msra.mxu0 0
        %1335 = vmatpush.bf16.xpose.msra.mxu0 0
        %1336 = vmatpush.bf16.xpose.msra.mxu0 %v1327
        %1337 = vmatmul.bf16.gmra.mxu0 %v1324
        %v1338 = vpop.f32.mrf.mxu0
        %v1339 = vadd.f32 %v937, %v1338
        %v1340 = vpop.f32.mrf.mxu0
        %1341 = vdwg.mxu0
        %v1342 = vsel %vm939, %v1339, -inf
        %1343 = vmax.xlane.f32.xlu0 %v1342
        %v1344 = vpop.xlane.xlu0 %1343
        %v1345 = vsub.f32 %v1339, %v1344
        %v1346 = vmul.f32 %v1345, 1.442695
        %v1347 = vpow.pop %v1346
        %v1348 = vsel %vm939, %v1347, 0.0
        %1349 = vadd.xlane.f32.xlu0 %v1348
        %v1350 = vpop.xlane.xlu0 %1349
        %v1351 = vrcp.pop %v1350
        %v1352 = vmul.f32 %v1347, %v1351
        %v1353 = vpack.c.bf16 %v1352, %v1352
        %1354 = vrot.lane.b32.xlu0 %v1263, 56
        %v1355 = vpop.permute.xlu0 %1354
        %v1357 = vsel %vm939, %v1353, 0
        %v1360 = vsel %vm979, %v1355, 0
        %1362 = vmatpush.bf16.msra.mxu0 0
        %1363 = vmatpush.bf16.msra.mxu0 0
        %1364 = vmatpush.bf16.msra.mxu0 0
        %1365 = vmatpush.bf16.msra.mxu0 0
        %1366 = vmatpush.bf16.msra.mxu0 0
        %1367 = vmatpush.bf16.msra.mxu0 0
        %1368 = vmatpush.bf16.msra.mxu0 0
        %1369 = vmatpush.bf16.msra.mxu0 %v1360
        %1370 = vmatmul.bf16.gmra.mxu0 %v1357
        %v1371 = vpop.f32.mrf.mxu0
        %v1372 = vadd.f32 0.0, %v1371
        %v1373 = vpop.f32.mrf.mxu0
        %1374 = vdwg.mxu0
        %v1375 = vpack.c.bf16 %v1372, %v1372
        %v1377 = vsel %vm939, %v1375, 0
        %v1380 = vsel %vm979, %v845, 0
        %1382 = vmatpush.bf16.msra.mxu0 0
        %1383 = vmatpush.bf16.msra.mxu0 0
        %1384 = vmatpush.bf16.msra.mxu0 0
        %1385 = vmatpush.bf16.msra.mxu0 0
        %1386 = vmatpush.bf16.msra.mxu0 0
        %1387 = vmatpush.bf16.msra.mxu0 0
        %1388 = vmatpush.bf16.msra.mxu0 0
        %1389 = vmatpush.bf16.msra.mxu0 %v1380
        %1390 = vmatmul.bf16.gmra.mxu0 %v1377
        %v1391 = vpop.f32.mrf.mxu0
        %v1392 = vadd.f32 0.0, %v1391
        %v1393 = vpop.f32.mrf.mxu0
        %1394 = vdwg.mxu0
        %v1396 = vsel %vm939, %v1318, 0
        %v1399 = vsel %vm979, %v844, 0
        %1401 = vmatpush.bf16.msra.mxu0 0
        %1402 = vmatpush.bf16.msra.mxu0 0
        %1403 = vmatpush.bf16.msra.mxu0 0
        %1404 = vmatpush.bf16.msra.mxu0 0
        %1405 = vmatpush.bf16.msra.mxu0 0
        %1406 = vmatpush.bf16.msra.mxu0 0
        %1407 = vmatpush.bf16.msra.mxu0 0
        %1408 = vmatpush.bf16.msra.mxu0 %v1399
        %1409 = vmatmul.bf16.gmra.mxu0 %v1396
        %v1410 = vpop.f32.mrf.mxu0
        %v1411 = vadd.f32 %v1392, %v1410
        %v1412 = vpop.f32.mrf.mxu0
        %1413 = vdwg.mxu0
        %1414 = vrot.lane.b32.xlu0 %v1258, 48
        %v1415 = vpop.permute.xlu0 %1414
        %1416 = vrot.lane.b32.xlu0 %v1263, 80
        %v1417 = vpop.permute.xlu0 %1416
        %v1419 = vsel %vm939, %v1415, 0
        %v1422 = vsel %vm939, %v1417, 0
        %1424 = vmatpush.bf16.xpose.msra.mxu0 0
        %1425 = vmatpush.bf16.xpose.msra.mxu0 0
        %1426 = vmatpush.bf16.xpose.msra.mxu0 0
        %1427 = vmatpush.bf16.xpose.msra.mxu0 0
        %1428 = vmatpush.bf16.xpose.msra.mxu0 0
        %1429 = vmatpush.bf16.xpose.msra.mxu0 0
        %1430 = vmatpush.bf16.xpose.msra.mxu0 0
        %1431 = vmatpush.bf16.xpose.msra.mxu0 %v1422
        %1432 = vmatmul.bf16.gmra.mxu0 %v1419
        %v1433 = vpop.f32.mrf.mxu0
        %v1434 = vadd.f32 %v937, %v1433
        %v1435 = vpop.f32.mrf.mxu0
        %1436 = vdwg.mxu0
        %v1437 = vsel %vm939, %v1434, -inf
        %1438 = vmax.xlane.f32.xlu0 %v1437
        %v1439 = vpop.xlane.xlu0 %1438
        %v1440 = vsub.f32 %v1434, %v1439
        %v1441 = vmul.f32 %v1440, 1.442695
        %v1442 = vpow.pop %v1441
        %v1443 = vsel %vm939, %v1442, 0.0
        %1444 = vadd.xlane.f32.xlu0 %v1443
        %v1445 = vpop.xlane.xlu0 %1444
        %v1446 = vrcp.pop %v1445
        %v1447 = vmul.f32 %v1442, %v1446
        %v1448 = vpack.c.bf16 %v1447, %v1447
        %1449 = vrot.lane.b32.xlu0 %v1263, 48
        %v1450 = vpop.permute.xlu0 %1449
        %v1452 = vsel %vm939, %v1448, 0
        %v1455 = vsel %vm979, %v1450, 0
        %1457 = vmatpush.bf16.msra.mxu0 0
        %1458 = vmatpush.bf16.msra.mxu0 0
        %1459 = vmatpush.bf16.msra.mxu0 0
        %1460 = vmatpush.bf16.msra.mxu0 0
        %1461 = vmatpush.bf16.msra.mxu0 0
        %1462 = vmatpush.bf16.msra.mxu0 0
        %1463 = vmatpush.bf16.msra.mxu0 0
        %1464 = vmatpush.bf16.msra.mxu0 %v1455
        %1465 = vmatmul.bf16.gmra.mxu0 %v1452
        %v1466 = vpop.f32.mrf.mxu0
        %v1467 = vadd.f32 0.0, %v1466
        %v1468 = vpop.f32.mrf.mxu0
        %1469 = vdwg.mxu0
        %v1470 = vpack.c.bf16 %v1467, %v1467
        %v1472 = vsel %vm939, %v1470, 0
        %v1475 = vsel %vm979, %v846, 0
        %1477 = vmatpush.bf16.msra.mxu0 0
        %1478 = vmatpush.bf16.msra.mxu0 0
        %1479 = vmatpush.bf16.msra.mxu0 0
        %1480 = vmatpush.bf16.msra.mxu0 0
        %1481 = vmatpush.bf16.msra.mxu0 0
        %1482 = vmatpush.bf16.msra.mxu0 0
        %1483 = vmatpush.bf16.msra.mxu0 0
        %1484 = vmatpush.bf16.msra.mxu0 %v1475
        %1485 = vmatmul.bf16.gmra.mxu0 %v1472
        %v1486 = vpop.f32.mrf.mxu0
        %v1487 = vadd.f32 0.0, %v1486
        %v1488 = vpop.f32.mrf.mxu0
        %1489 = vdwg.mxu0
        %v1490 = vadd.f32 %v1411, %v1487
        %1491 = vrot.lane.b32.xlu0 %v1258, 40
        %v1492 = vpop.permute.xlu0 %1491
        %1493 = vrot.lane.b32.xlu0 %v1263, 72
        %v1494 = vpop.permute.xlu0 %1493
        %v1496 = vsel %vm939, %v1492, 0
        %v1499 = vsel %vm939, %v1494, 0
        %1501 = vmatpush.bf16.xpose.msra.mxu0 0
        %1502 = vmatpush.bf16.xpose.msra.mxu0 0
        %1503 = vmatpush.bf16.xpose.msra.mxu0 0
        %1504 = vmatpush.bf16.xpose.msra.mxu0 0
        %1505 = vmatpush.bf16.xpose.msra.mxu0 0
        %1506 = vmatpush.bf16.xpose.msra.mxu0 0
        %1507 = vmatpush.bf16.xpose.msra.mxu0 0
        %1508 = vmatpush.bf16.xpose.msra.mxu0 %v1499
        %1509 = vmatmul.bf16.gmra.mxu0 %v1496
        %v1510 = vpop.f32.mrf.mxu0
        %v1511 = vadd.f32 %v937, %v1510
        %v1512 = vpop.f32.mrf.mxu0
        %1513 = vdwg.mxu0
        %v1514 = vsel %vm939, %v1511, -inf
        %1515 = vmax.xlane.f32.xlu0 %v1514
        %v1516 = vpop.xlane.xlu0 %1515
        %v1517 = vsub.f32 %v1511, %v1516
        %v1518 = vmul.f32 %v1517, 1.442695
        %v1519 = vpow.pop %v1518
        %v1520 = vsel %vm939, %v1519, 0.0
        %1521 = vadd.xlane.f32.xlu0 %v1520
        %v1522 = vpop.xlane.xlu0 %1521
        %v1523 = vrcp.pop %v1522
        %v1524 = vmul.f32 %v1519, %v1523
        %v1525 = vpack.c.bf16 %v1524, %v1524
        %1526 = vrot.lane.b32.xlu0 %v1263, 40
        %v1527 = vpop.permute.xlu0 %1526
        %v1529 = vsel %vm939, %v1525, 0
        %v1532 = vsel %vm979, %v1527, 0
        %1534 = vmatpush.bf16.msra.mxu0 0
        %1535 = vmatpush.bf16.msra.mxu0 0
        %1536 = vmatpush.bf16.msra.mxu0 0
        %1537 = vmatpush.bf16.msra.mxu0 0
        %1538 = vmatpush.bf16.msra.mxu0 0
        %1539 = vmatpush.bf16.msra.mxu0 0
        %1540 = vmatpush.bf16.msra.mxu0 0
        %1541 = vmatpush.bf16.msra.mxu0 %v1532
        %1542 = vmatmul.bf16.gmra.mxu0 %v1529
        %v1543 = vpop.f32.mrf.mxu0
        %v1544 = vadd.f32 0.0, %v1543
        %v1545 = vpop.f32.mrf.mxu0
        %1546 = vdwg.mxu0
        %v1547 = vpack.c.bf16 %v1544, %v1544
        %v1549 = vsel %vm939, %v1547, 0
        %v1552 = vsel %vm979, %v847, 0
        %1554 = vmatpush.bf16.msra.mxu0 0
        %1555 = vmatpush.bf16.msra.mxu0 0
        %1556 = vmatpush.bf16.msra.mxu0 0
        %1557 = vmatpush.bf16.msra.mxu0 0
        %1558 = vmatpush.bf16.msra.mxu0 0
        %1559 = vmatpush.bf16.msra.mxu0 0
        %1560 = vmatpush.bf16.msra.mxu0 0
        %1561 = vmatpush.bf16.msra.mxu0 %v1552
        %1562 = vmatmul.bf16.gmra.mxu0 %v1549
        %v1563 = vpop.f32.mrf.mxu0
        %v1564 = vadd.f32 0.0, %v1563
        %v1565 = vpop.f32.mrf.mxu0
        %1566 = vdwg.mxu0
        %v1567 = vadd.f32 %v1490, %v1564
        %s1568 = scalar_lea.vmem %s8, 1
        %v1569 = vld [vmem:[%s1568] sm:$0x1]
        %v1571 = vperm.slane %v1569, 0
        %v1573 = vadd.f32 %v1567, %v1571
        %v1574 = vadd.f32 %v1253, %v860
        %v1575 = vld [vmem:[%s9] sm:$0x1]
        %v1576 = vld [vmem:[%s10] sm:$0x1]
        %v1577 = vsel %vm882, %v1574, 0.0
        %1578 = vadd.xlane.f32.xlu0 %v1577
        %v1579 = vpop.xlane.xlu0 %1578
        %v1580 = vrcp.pop 32.0
        %v1581 = vmul.f32 32.0, %v1580
        %v1582 = vsub.f32 1.0, %v1581
        %v1583 = vmul.f32 %v1580, %v1582
        %v1584 = vadd.f32 %v1580, %v1583
        %vm1585 = vweird.f32 %v1580
        %v1586 = vsel %vm1585, %v1580, %v1584
        %v1587 = vmul.f32 %v1579, %v1586
        %v1588 = vsub.f32 %v1574, %v1587
        %v1589 = vmul.f32 %v1588, %v1588
        %v1590 = vsel %vm882, %v1589, 0.0
        %1591 = vadd.xlane.f32.xlu0 %v1590
        %v1592 = vpop.xlane.xlu0 %1591
        %v1593 = vmul.f32 %v1592, %v1586
        %v1594 = vadd.f32 %v1593, 1e-05
        %v1595 = vrsqrt.pop %v1594
        %v1596 = vmul.f32 %v1595, %v1594
        %v1597 = vmul.f32 %v1596, %v1595
        %v1598 = vmul.f32 0.5, %v1597
        %v1599 = vsub.f32 1.5, %v1598
        %v1600 = vmul.f32 %v1595, %v1599
        %vm1601 = vweird.f32 %v1594
        %vm1602 = vweird.f32 %v1595
        %vm1603 = vmor %vm1601, %vm1602
        %v1604 = vsel %vm1603, %v1595, %v1600
        %v1605 = vmul.f32 %v1588, %v1604
        %v1607 = vperm.slane %v1575, 0
        %v1609 = vmul.f32 %v1605, %v1607
        %v1611 = vperm.slane %v1576, 0
        %v1613 = vadd.f32 %v1609, %v1611
        %v1614 = vadd.f32 %v1573, %v861
        %s1615 = scalar_lea.vmem %s9, 1
        %v1616 = vld [vmem:[%s1615] sm:$0x1]
        %s1617 = scalar_lea.vmem %s10, 1
        %v1618 = vld [vmem:[%s1617] sm:$0x1]
        %v1619 = vsel %vm882, %v1614, 0.0
        %1620 = vadd.xlane.f32.xlu0 %v1619
        %v1621 = vpop.xlane.xlu0 %1620
        %v1622 = vmul.f32 %v1621, %v1586
        %v1623 = vsub.f32 %v1614, %v1622
        %v1624 = vmul.f32 %v1623, %v1623
        %v1625 = vsel %vm882, %v1624, 0.0
        %1626 = vadd.xlane.f32.xlu0 %v1625
        %v1627 = vpop.xlane.xlu0 %1626
        %v1628 = vmul.f32 %v1627, %v1586
        %v1629 = vadd.f32 %v1628, 1e-05
        %v1630 = vrsqrt.pop %v1629
        %v1631 = vmul.f32 %v1630, %v1629
        %v1632 = vmul.f32 %v1631, %v1630
        %v1633 = vmul.f32 0.5, %v1632
        %v1634 = vsub.f32 1.5, %v1633
        %v1635 = vmul.f32 %v1630, %v1634
        %vm1636 = vweird.f32 %v1629
        %vm1637 = vweird.f32 %v1630
        %vm1638 = vmor %vm1636, %vm1637
        %v1639 = vsel %vm1638, %v1630, %v1635
        %v1640 = vmul.f32 %v1623, %v1639
        %v1642 = vperm.slane %v1616, 0
        %v1644 = vmul.f32 %v1640, %v1642
        %v1646 = vperm.slane %v1618, 0
        %v1648 = vadd.f32 %v1644, %v1646
        %v1649 = vpack.c.bf16 %v1613, %v1613
        %v1650 = vpack.c.bf16 %v1648, %v1648
        %v1655 = vunpack.c.l.b16 %v852
        %v1656 = vunpack.c.l.b16 %v853
        %v1657 = vunpack.c.l.b16 %v854
        %v1658 = vunpack.c.l.b16 %v855
        %v1659 = vpack.c.b16 %v1656, %v1655
        %v1660 = vpack.c.b16 %v1658, %v1657
        %v1664 = vsel %vm882, %v1650, 0
        %1666 = vmatpush.bf16.msra.mxu0 0
        %1667 = vmatpush.bf16.msra.mxu0 0
        %1668 = vmatpush.bf16.msra.mxu0 0
        %1669 = vmatpush.bf16.msra.mxu0 0
        %1670 = vmatpush.bf16.msra.mxu0 0
        %1671 = vmatpush.bf16.msra.mxu0 0
        %1672 = vmatpush.bf16.msra.mxu0 %v1660
        %1673 = vmatpush.bf16.msra.mxu0 %v1659
        %1674 = vmatmul.bf16.gmra.mxu0 %v1664
        %v1675 = vpop.f32.mrf.mxu0
        %v1676 = vadd.f32 0.0, %v1675
        %v1677 = vpop.f32.mrf.mxu0
        %1678 = vdwg.mxu0
        %v1683 = vunpack.c.l.b16 %v848
        %v1684 = vunpack.c.l.b16 %v849
        %v1685 = vunpack.c.l.b16 %v850
        %v1686 = vunpack.c.l.b16 %v851
        %v1687 = vpack.c.b16 %v1684, %v1683
        %v1688 = vpack.c.b16 %v1686, %v1685
        %v1692 = vsel %vm882, %v1649, 0
        %1694 = vmatpush.bf16.msra.mxu0 0
        %1695 = vmatpush.bf16.msra.mxu0 0
        %1696 = vmatpush.bf16.msra.mxu0 0
        %1697 = vmatpush.bf16.msra.mxu0 0
        %1698 = vmatpush.bf16.msra.mxu0 0
        %1699 = vmatpush.bf16.msra.mxu0 0
        %1700 = vmatpush.bf16.msra.mxu0 %v1688
        %1701 = vmatpush.bf16.msra.mxu0 %v1687
        %1702 = vmatmul.bf16.gmra.mxu0 %v1692
        %v1703 = vpop.f32.mrf.mxu0
        %v1704 = vadd.f32 %v1676, %v1703
        %v1705 = vpop.f32.mrf.mxu0
        %1706 = vdwg.mxu0
        %v1708 = vrot.slane %v1704, 7
        %1709 = vrot.lane.b32.xlu0 %v1708, 96
        %v1710 = vpop.permute.xlu0 %1709
        %vm1712 = vcmask 1040384
        %v1713 = vsel %vm1712, 0.0, %v1710
        %v1714 = vrot.slane %v1704, 1
        %vm1716 = vcmask 1046528
        %v1717 = vsel %vm1716, %v1714, 0.0
        %v1718 = vadd.f32 %v1704, %v1713
        %1720 = vrot.lane.b32.xlu0 %v1717, 64
        %v1721 = vpop.permute.xlu0 %1720
        %v1723 = vadd.f32 %v1718, %v1721
        %v1724 = vld [vmem:[%s13] sm:$0x1]
        %v1726 = vperm.slane %v1724, 0
        %v1728 = vadd.f32 %v1723, %v1726
        %v1729 = vmax.f32 %v1728, 0.0
        %v1730 = vpack.c.bf16 %v1729, %v1729
        %v1731 = vld [vmem:[%s15] sm:$0x1]
        %v1733 = vperm.slane %v1731, 0
        %v1739 = vunpack.c.l.b16 %v856
        %v1740 = vunpack.c.l.b16 %v857
        %v1741 = vunpack.c.l.b16 %v858
        %v1742 = vunpack.c.l.b16 %v859
        %v1743 = vpack.c.b16 %v1740, %v1739
        %v1744 = vpack.c.b16 %v1742, %v1741
        %v1748 = vsel %vm882, %v1730, 0
        %1750 = vmatpush.bf16.msra.mxu0 0
        %1751 = vmatpush.bf16.msra.mxu0 0
        %1752 = vmatpush.bf16.msra.mxu0 0
        %1753 = vmatpush.bf16.msra.mxu0 0
        %1754 = vmatpush.bf16.msra.mxu0 0
        %1755 = vmatpush.bf16.msra.mxu0 0
        %1756 = vmatpush.bf16.msra.mxu0 %v1744
        %1757 = vmatpush.bf16.msra.mxu0 %v1743
        %1758 = vmatmul.bf16.gmra.mxu0 %v1748
        %v1759 = vpop.f32.mrf.mxu0
        %v1760 = vadd.f32 %v1733, %v1759
        %v1761 = vpop.f32.mrf.mxu0
        %1762 = vdwg.mxu0
        %v1763 = vadd.f32 %v1760, %v1613
        %v1764 = vld [vmem:[%s16] sm:$0x1]
        %v1765 = vld [vmem:[%s17] sm:$0x1]
        %v1766 = vsel %vm882, %v1763, 0.0
        %1767 = vadd.xlane.f32.xlu0 %v1766
        %v1768 = vpop.xlane.xlu0 %1767
        %v1769 = vmul.f32 %v1768, %v1586
        %v1770 = vsub.f32 %v1763, %v1769
        %v1771 = vmul.f32 %v1770, %v1770
        %v1772 = vsel %vm882, %v1771, 0.0
        %1773 = vadd.xlane.f32.xlu0 %v1772
        %v1774 = vpop.xlane.xlu0 %1773
        %v1775 = vmul.f32 %v1774, %v1586
        %v1776 = vadd.f32 %v1775, 1e-05
        %v1777 = vrsqrt.pop %v1776
        %v1778 = vmul.f32 %v1777, %v1776
        %v1779 = vmul.f32 %v1778, %v1777
        %v1780 = vmul.f32 0.5, %v1779
        %v1781 = vsub.f32 1.5, %v1780
        %v1782 = vmul.f32 %v1777, %v1781
        %vm1783 = vweird.f32 %v1776
        %vm1784 = vweird.f32 %v1777
        %vm1785 = vmor %vm1783, %vm1784
        %v1786 = vsel %vm1785, %v1777, %v1782
        %v1787 = vmul.f32 %v1770, %v1786
        %v1789 = vperm.slane %v1764, 0
        %v1791 = vmul.f32 %v1787, %v1789
        %v1793 = vperm.slane %v1765, 0
        %v1795 = vadd.f32 %v1791, %v1793
        %1796 = vst.msk [vmem:[%s822] sm:$0xff] %vm882, %v1795
        %v1797 = vadd.f32 %v1760, %v1648
        %s1798 = scalar_lea.vmem %s16, 1
        %v1799 = vld [vmem:[%s1798] sm:$0x1]
        %s1800 = scalar_lea.vmem %s17, 1
        %v1801 = vld [vmem:[%s1800] sm:$0x1]
        %v1802 = vsel %vm882, %v1797, 0.0
        %1803 = vadd.xlane.f32.xlu0 %v1802
        %v1804 = vpop.xlane.xlu0 %1803
        %v1805 = vmul.f32 %v1804, %v1586
        %v1806 = vsub.f32 %v1797, %v1805
        %v1807 = vmul.f32 %v1806, %v1806
        %v1808 = vsel %vm882, %v1807, 0.0
        %1809 = vadd.xlane.f32.xlu0 %v1808
        %v1810 = vpop.xlane.xlu0 %1809
        %v1811 = vmul.f32 %v1810, %v1586
        %v1812 = vadd.f32 %v1811, 1e-05
        %v1813 = vrsqrt.pop %v1812
        %v1814 = vmul.f32 %v1813, %v1812
        %v1815 = vmul.f32 %v1814, %v1813
        %v1816 = vmul.f32 0.5, %v1815
        %v1817 = vsub.f32 1.5, %v1816
        %v1818 = vmul.f32 %v1813, %v1817
        %vm1819 = vweird.f32 %v1812
        %vm1820 = vweird.f32 %v1813
        %vm1821 = vmor %vm1819, %vm1820
        %v1822 = vsel %vm1821, %v1813, %v1818
        %v1823 = vmul.f32 %v1806, %v1822
        %v1825 = vperm.slane %v1799, 0
        %v1827 = vmul.f32 %v1823, %v1825
        %v1829 = vperm.slane %v1801, 0
        %v1831 = vadd.f32 %v1827, %v1829
        %1832 = vst.msk [vmem:[%s829] sm:$0xff] %vm882, %v1831
        %s1833 = sand.u32 %s448, 1
        %s1834 = scalar_lea.sflag [#allocation4], %s1833
        %s1835 = sand.u32 %s448, 1
        %s1836 = smul.addr %s1835, 8
        %s1837 = scalar_lea.vmem [#allocation20], %s1836
        %s1838 = sand.u32 %s474, 1
        %s1839 = scalar_lea.sflag [#allocation22], %s1838
        %s1840 = sand.u32 %s474, 1
        %s1841 = smul.addr %s1840, 8
        %s1842 = scalar_lea.vmem [#allocation21], %s1841
        // Predicated region
        $region137: #{tpu_custom_call.1} parent=91 // pred_check
          %p1843 = pneg %p458
        $region138: #{tpu_custom_call.1} parent=91 // pred_check_branch
          %1845 = sbr.rel (%p1843) target = $region140
        $region139: #{tpu_custom_call.1} parent=91 // pred_region
          %1847 = vsyncadd %s1834, 0
          %s1848 = smul.addr %s47, 8
          %s1849 = scalar_lea.hbm %s18, %s1848
          %s1851 = sshll.u32 %s1837, 4
          %s1852 = int_to_ptr.vmem [resolvable:$true] %s1851
          %s1853 = sshll.u32 %s1849, 4
          %s1854 = int_to_ptr.hbm [resolvable:$true] %s1853
          %1856 = dma.vmem_to_hbm [thread:$0]  %s1852, 128, %s1854, %s1834
        $region140: #{tpu_custom_call.1} parent=91 // pred_fallthru
          _
        // Predicated region
        $region141: #{tpu_custom_call.1} parent=91 // pred_check
          %p1857 = pneg %p484
        $region142: #{tpu_custom_call.1} parent=91 // pred_check_branch
          %1859 = sbr.rel (%p1857) target = $region144
        $region143: #{tpu_custom_call.1} parent=91 // pred_region
          %1861 = vsyncadd %s1839, 0
          %s1862 = smul.addr %s47, 8
          %s1863 = scalar_lea.hbm %s19, %s1862
          %s1865 = sshll.u32 %s1842, 4
          %s1866 = int_to_ptr.vmem [resolvable:$true] %s1865
          %s1867 = sshll.u32 %s1863, 4
          %s1868 = int_to_ptr.hbm [resolvable:$true] %s1867
          %1870 = dma.vmem_to_hbm [thread:$0]  %s1866, 128, %s1868, %s1839
        $region144: #{tpu_custom_call.1} parent=91 // pred_fallthru
          _
      $region92: #{tpu_custom_call.1} parent=5 // pred_fallthru
        _
      %p1871 = scmp.le.s32.totalorder 2, %s42
      // Predicated region
      $region145: #{tpu_custom_call.1} parent=5 // pred_check
        %p1872 = pneg %p1871
      $region146: #{tpu_custom_call.1} parent=5 // pred_check_branch
        %1874 = sbr.rel (%p1872) target = $region148
      $region147: #{tpu_custom_call.1} parent=5 // pred_region
        %s1875 = ssub.s32 %s42, 2
        // Predicated region
        $region149: #{tpu_custom_call.1} parent=147 // pred_check
          %p1876 = pneg %p464
        $region150: #{tpu_custom_call.1} parent=147 // pred_check_branch
          %1878 = sbr.rel (%p1876) target = $region152
        $region151: #{tpu_custom_call.1} parent=147 // pred_region
          %s1879 = sand.u32 %s449, 1
          %s1880 = scalar_lea.sflag [#allocation4], %s1879
          %s1881 = sand.u32 %s449, 1
          %s1882 = smul.addr %s1881, 8
          %s1883 = scalar_lea.vmem [#allocation20], %s1882
          %1885 = dma.done %s1880, 128
        $region152: #{tpu_custom_call.1} parent=147 // pred_fallthru
          _
        // Predicated region
        $region153: #{tpu_custom_call.1} parent=147 // pred_check
          %p1886 = pneg %p490
        $region154: #{tpu_custom_call.1} parent=147 // pred_check_branch
          %1888 = sbr.rel (%p1886) target = $region156
        $region155: #{tpu_custom_call.1} parent=147 // pred_region
          %s1889 = sand.u32 %s475, 1
          %s1890 = scalar_lea.sflag [#allocation22], %s1889
          %s1891 = sand.u32 %s475, 1
          %s1892 = smul.addr %s1891, 8
          %s1893 = scalar_lea.vmem [#allocation21], %s1892
          %1895 = dma.done %s1890, 128
        $region156: #{tpu_custom_call.1} parent=147 // pred_fallthru
          _
      $region148: #{tpu_custom_call.1} parent=5 // pred_fallthru
        _
    $region6: #{tpu_custom_call.1} parent=1 // loop_footer
      %s46 = sadd.s32 1, %s42
    $region7: #{tpu_custom_call.1} parent=1 // loop_footer_branch
      %41 = sbr.rel target = $region3
    $region8: #{tpu_custom_call.1} parent=1 // loop_exit
      _
    %1896 = vsyncpa [#allocation3], 1
    %s1897 = scalar_lea.sflag [#allocation3], 1
    %1898 = vsyncpa %s1897, 1
    %1899 = vsyncpa [#allocation6], 1
    %s1900 = scalar_lea.sflag [#allocation6], 1
    %1901 = vsyncpa %s1900, 1
    %1902 = vsyncpa [#allocation9], 1
    %1903 = vsyncpa [#allocation12], 1
    %1904 = vsyncpa [#allocation15], 1
    %1905 = vsyncpa [#allocation18], 1
    %1906 = vsyncpa [#allocation4], 1
    %s1907 = scalar_lea.sflag [#allocation4], 1
    %1908 = vsyncpa %s1907, 1
    %1909 = vsyncpa [#allocation22], 1
    %s1910 = scalar_lea.sflag [#allocation22], 1
    %1911 = vsyncpa %s1910, 1

</llo_original>
